<compile_context>
chip_gen: v7x
topology: tpu7x:2x2x1
jax: 0.10.0
libtpu: 0.0.40
codegen_flags: <defaults>
</compile_context>

<pallas_src>
import jax
import jax.numpy as jnp
from jax.experimental import pallas as pl
from jax.experimental.pallas import tpu as pltpu

LANES = 128           # vreg lane width
CHUNK = 16            # rows processed per inner-loop step (2 f32 sublane tiles)
MAX_TILE_ROWS = 4096  # rows of 128 lanes per grid step (2 MiB / f32 array)
H1 = 10               # fc1 width
H2 = 10               # fc2 width

# Packed-parameter layout (single 1-D f32 SMEM vector).
OFF_W1 = 0                    # (10,)   fc1 weight (in=1)
OFF_B1 = OFF_W1 + H1          # (10,)   fc1 bias
OFF_W2 = OFF_B1 + H1          # (10,10) fc2 weight, stored (in, out) row-major
OFF_B2 = OFF_W2 + H1 * H2     # (10,)   fc2 bias
OFF_WM = OFF_B2 + H2          # (10,)   fc_mean weight
OFF_WV = OFF_WM + H2          # (10,)   fc_log_var weight
OFF_BM = OFF_WV + H2          # ()      fc_mean bias
OFF_BV = OFF_BM + 1           # ()      fc_log_var bias
N_PARAMS = OFF_BV + 1         # 152


def _cdiv(a, b):
    return -(-a // b)


def _round_up(a, b):
    return _cdiv(a, b) * b


def _choose_tiling(rows):
    """rows (multiple of CHUNK) -> (tile_rows, num_tiles, rows_pad)."""
    num_tiles = max(_cdiv(rows, MAX_TILE_ROWS), 1)
    if rows >= 2 * CHUNK:
        # v7x has 2 TensorCores; dimension_semantics=("parallel",) shards the
        # grid across them, so keep at least two tiles whenever possible.
        num_tiles = max(num_tiles, 2)
    tile_rows = _round_up(_cdiv(rows, num_tiles), CHUNK)
    rows_pad = num_tiles * tile_rows
    return tile_rows, num_tiles, rows_pad


def _mlp_kernel(x_ref, p_ref, mean_ref, var_ref):
    # Hoist all (tiny) scalar weight loads out of the chunk loop: SMEM -> sregs.
    w1 = [p_ref[OFF_W1 + j] for j in range(H1)]
    b1 = [p_ref[OFF_B1 + j] for j in range(H1)]
    w2 = [[p_ref[OFF_W2 + k * H2 + j] for j in range(H2)] for k in range(H1)]
    b2 = [p_ref[OFF_B2 + j] for j in range(H2)]
    wm = [p_ref[OFF_WM + k] for k in range(H2)]
    wv = [p_ref[OFF_WV + k] for k in range(H2)]
    bm = p_ref[OFF_BM]
    bv = p_ref[OFF_BV]

    n_chunks = x_ref.shape[0] // CHUNK

    @pl.loop(0, n_chunks)
    def _(c):
        r = pl.multiple_of(c * CHUNK, CHUNK)
        x = x_ref[pl.ds(r, CHUNK), :]                     # (16, 128) batch slab

        # fc1 + ReLU  (K = 1 contraction -> pure broadcast-FMA on the VPU).
        h1 = [jnp.maximum(x * w1[j] + b1[j], 0.0) for j in range(H1)]

        # fc2 + ReLU  (10x10 scalar-weight FMAs over full (16,128) slabs).
        h2 = []
        for j in range(H2):
            acc = h1[0] * w2[0][j]
            for k in range(1, H1):
                acc = acc + h1[k] * w2[k][j]
            h2.append(jnp.maximum(acc + b2[j], 0.0))

        # Fused mean / log-var heads.
        mean = h2[0] * wm[0]
        logv = h2[0] * wv[0]
        for k in range(1, H2):
            mean = mean + h2[k] * wm[k]
            logv = logv + h2[k] * wv[k]

        mean_ref[pl.ds(r, CHUNK), :] = mean + bm
        var_ref[pl.ds(r, CHUNK), :] = jnp.exp(logv + bv)  # exp on the EUP


def regression_model_forward_packed(x2, packed_params):
    """Lane-dense entry point.

    x2: (rows, 128) float32, rows a multiple of CHUNK.  Returns (mean2, var2)
    with the same (rows, 128) layout — no extra pad / slice HBM passes when
    rows is already grid-aligned (e.g. a multiple of 2 * MAX_TILE_ROWS or any
    value _choose_tiling maps onto itself).
    """
    rows, lanes = x2.shape
    assert lanes == LANES and rows % CHUNK == 0

    tile_rows, num_tiles, rows_pad = _choose_tiling(rows)
    if rows_pad != rows:
        x2 = jnp.pad(x2, ((0, rows_pad - rows), (0, 0)))

    data_spec = pl.BlockSpec((tile_rows, LANES), lambda i: (i, 0))
    smem_spec = pl.BlockSpec(memory_space=pltpu.MemorySpace.SMEM)
    n_elems = rows_pad * LANES

    mean2, var2 = pl.pallas_call(
        _mlp_kernel,
        out_shape=(jax.ShapeDtypeStruct((rows_pad, LANES), jnp.float32),
                   jax.ShapeDtypeStruct((rows_pad, LANES), jnp.float32)),
        grid=(num_tiles,),
        in_specs=[data_spec, smem_spec],
        out_specs=(data_spec, data_spec),
        compiler_params=pltpu.CompilerParams(
            dimension_semantics=("parallel",),
            vmem_limit_bytes=32 * 1024 * 1024),
        cost_estimate=pl.CostEstimate(
            flops=292 * n_elems, transcendentals=n_elems,
            bytes_accessed=12 * n_elems),
    )(x2, packed_params)

    if rows_pad != rows:
        mean2 = mean2[:rows]
        var2 = var2[:rows]
    return mean2, var2


def pack_params(params):
    """Flatten all weights/biases into one 1-D f32 vector (SMEM friendly)."""
    packed = jnp.concatenate([
        params["w1"].reshape(-1), params["b1"].reshape(-1),
        params["w2"].reshape(-1), params["b2"].reshape(-1),
        params["wh"][:, 0].reshape(-1), params["wh"][:, 1].reshape(-1),
        params["bh"].reshape(-1),
    ]).astype(jnp.float32)
    assert packed.shape == (N_PARAMS,)
    return packed


def regression_model_forward(x, params):
    """x: (N, 1) float32. Returns (mean, var), each (N, 1) float32."""
    n = x.shape[0]
    rows = _round_up(max(_cdiv(n, LANES), 1), CHUNK)
    _, _, rows_pad = _choose_tiling(rows)      # pad once, directly to grid size
    n_pad = rows_pad * LANES

    x2 = jnp.pad(x.reshape(-1).astype(jnp.float32),
                 (0, n_pad - n)).reshape(rows_pad, LANES)
    packed = pack_params(params)               # tiny; hoist out of hot loops

    mean2, var2 = regression_model_forward_packed(x2, packed)

    mean = mean2.reshape(-1)[:n].reshape(n, 1)
    var = var2.reshape(-1)[:n].reshape(n, 1)
    return mean, var


def init_params(key):
    """Deterministic init matching nn.Linear (uniform +-1/sqrt(fan_in)).

    Weights are stored as (in_features, out_features); the two heads are fused
    into wh: (10, 2) [mean | log_var] and bh: (2,).
    """
    ks = jax.random.split(key, 8)

    def u(k, shape, fan_in):
        bound = 1.0 / (float(fan_in) ** 0.5)
        return jax.random.uniform(k, shape, jnp.float32, -bound, bound)

    w1 = u(ks[0], (H1,), 1)          # fc1: in=1, out=10
    b1 = u(ks[1], (H1,), 1)
    w2 = u(ks[2], (H1, H2), H1)      # fc2: in=10, out=10  (stored (in, out))
    b2 = u(ks[3], (H2,), H1)
    wm = u(ks[4], (H2,), H2)         # fc_mean
    bm = u(ks[5], (), H2)
    wv = u(ks[6], (H2,), H2)         # fc_log_var
    bv = u(ks[7], (), H2)
    wh = jnp.stack([wm, wv], axis=1)  # (10, 2)
    bh = jnp.stack([bm, bv])          # (2,)
    return {"w1": w1, "b1": b1, "w2": w2, "b2": b2, "wh": wh, "bh": bh}


def _reference(x, p):
    h1 = jnp.maximum(x @ p["w1"][None, :] + p["b1"][None, :], 0.0)
    h2 = jnp.maximum(h1 @ p["w2"] + p["b2"][None, :], 0.0)
    heads = h2 @ p["wh"] + p["bh"][None, :]
    return heads[:, 0:1], jnp.exp(heads[:, 1:2])


if __name__ == "__main__":
    key = jax.random.PRNGKey(0)
    k_param, _ = jax.random.split(key)
    params = init_params(k_param)

    # Same shape as the spec's np.linspace(-1, 1, 100) inputs, as a (N, 1) batch.
    n = 100
    x = jnp.linspace(-1.0, 1.0, n, dtype=jnp.float32).reshape(n, 1)

    mean, var = regression_model_forward(x, params)
    jax.block_until_ready((mean, var))

    ref_mean, ref_var = _reference(x, params)
    assert mean.shape == (n, 1) and var.shape == (n, 1)
    assert jnp.allclose(mean, ref_mean, atol=1e-5, rtol=1e-5)
    assert jnp.allclose(var, ref_var, atol=1e-5, rtol=1e-5)

    print("KERNEL_OK")
</pallas_src>

<mosaic_0001>
module attributes {stable_mosaic.version = 11 : i64} {
  func.func @_mlp_kernel(%arg0: i32, %arg1: memref<16x128xf32, #tpu.memory_space<vmem>>, %arg2: memref<152xf32, #tpu.memory_space<smem>>, %arg3: memref<16x128xf32, #tpu.memory_space<vmem>>, %arg4: memref<16x128xf32, #tpu.memory_space<vmem>>) attributes {dimension_semantics = [#tpu.dimension_semantics<parallel>], iteration_bounds = array<i64: 1>, scalar_prefetch = 0 : i64, scratch_operands = 0 : i64, tpu.core_type = #tpu.core_type<tc>, window_params = [{transform_indices = @transform_0, window_bounds = array<i64: 16, 128>}, {transform_indices = @transform_1, window_bounds = array<i64: 152>}, {transform_indices = @transform_2, window_bounds = array<i64: 16, 128>}, {transform_indices = @transform_3, window_bounds = array<i64: 16, 128>}]} {
    %c0 = arith.constant 0 : index
    %0 = memref.load %arg2[%c0] : memref<152xf32, #tpu.memory_space<smem>>
    %c1 = arith.constant 1 : index
    %1 = memref.load %arg2[%c1] : memref<152xf32, #tpu.memory_space<smem>>
    %c2 = arith.constant 2 : index
    %2 = memref.load %arg2[%c2] : memref<152xf32, #tpu.memory_space<smem>>
    %c3 = arith.constant 3 : index
    %3 = memref.load %arg2[%c3] : memref<152xf32, #tpu.memory_space<smem>>
    %c4 = arith.constant 4 : index
    %4 = memref.load %arg2[%c4] : memref<152xf32, #tpu.memory_space<smem>>
    %c5 = arith.constant 5 : index
    %5 = memref.load %arg2[%c5] : memref<152xf32, #tpu.memory_space<smem>>
    %c6 = arith.constant 6 : index
    %6 = memref.load %arg2[%c6] : memref<152xf32, #tpu.memory_space<smem>>
    %c7 = arith.constant 7 : index
    %7 = memref.load %arg2[%c7] : memref<152xf32, #tpu.memory_space<smem>>
    %c8 = arith.constant 8 : index
    %8 = memref.load %arg2[%c8] : memref<152xf32, #tpu.memory_space<smem>>
    %c9 = arith.constant 9 : index
    %9 = memref.load %arg2[%c9] : memref<152xf32, #tpu.memory_space<smem>>
    %c10 = arith.constant 10 : index
    %10 = memref.load %arg2[%c10] : memref<152xf32, #tpu.memory_space<smem>>
    %c11 = arith.constant 11 : index
    %11 = memref.load %arg2[%c11] : memref<152xf32, #tpu.memory_space<smem>>
    %c12 = arith.constant 12 : index
    %12 = memref.load %arg2[%c12] : memref<152xf32, #tpu.memory_space<smem>>
    %c13 = arith.constant 13 : index
    %13 = memref.load %arg2[%c13] : memref<152xf32, #tpu.memory_space<smem>>
    %c14 = arith.constant 14 : index
    %14 = memref.load %arg2[%c14] : memref<152xf32, #tpu.memory_space<smem>>
    %c15 = arith.constant 15 : index
    %15 = memref.load %arg2[%c15] : memref<152xf32, #tpu.memory_space<smem>>
    %c16 = arith.constant 16 : index
    %16 = memref.load %arg2[%c16] : memref<152xf32, #tpu.memory_space<smem>>
    %c17 = arith.constant 17 : index
    %17 = memref.load %arg2[%c17] : memref<152xf32, #tpu.memory_space<smem>>
    %c18 = arith.constant 18 : index
    %18 = memref.load %arg2[%c18] : memref<152xf32, #tpu.memory_space<smem>>
    %c19 = arith.constant 19 : index
    %19 = memref.load %arg2[%c19] : memref<152xf32, #tpu.memory_space<smem>>
    %c20 = arith.constant 20 : index
    %20 = memref.load %arg2[%c20] : memref<152xf32, #tpu.memory_space<smem>>
    %c21 = arith.constant 21 : index
    %21 = memref.load %arg2[%c21] : memref<152xf32, #tpu.memory_space<smem>>
    %c22 = arith.constant 22 : index
    %22 = memref.load %arg2[%c22] : memref<152xf32, #tpu.memory_space<smem>>
    %c23 = arith.constant 23 : index
    %23 = memref.load %arg2[%c23] : memref<152xf32, #tpu.memory_space<smem>>
    %c24 = arith.constant 24 : index
    %24 = memref.load %arg2[%c24] : memref<152xf32, #tpu.memory_space<smem>>
    %c25 = arith.constant 25 : index
    %25 = memref.load %arg2[%c25] : memref<152xf32, #tpu.memory_space<smem>>
    %c26 = arith.constant 26 : index
    %26 = memref.load %arg2[%c26] : memref<152xf32, #tpu.memory_space<smem>>
    %c27 = arith.constant 27 : index
    %27 = memref.load %arg2[%c27] : memref<152xf32, #tpu.memory_space<smem>>
    %c28 = arith.constant 28 : index
    %28 = memref.load %arg2[%c28] : memref<152xf32, #tpu.memory_space<smem>>
    %c29 = arith.constant 29 : index
    %29 = memref.load %arg2[%c29] : memref<152xf32, #tpu.memory_space<smem>>
    %c30 = arith.constant 30 : index
    %30 = memref.load %arg2[%c30] : memref<152xf32, #tpu.memory_space<smem>>
    %c31 = arith.constant 31 : index
    %31 = memref.load %arg2[%c31] : memref<152xf32, #tpu.memory_space<smem>>
    %c32 = arith.constant 32 : index
    %32 = memref.load %arg2[%c32] : memref<152xf32, #tpu.memory_space<smem>>
    %c33 = arith.constant 33 : index
    %33 = memref.load %arg2[%c33] : memref<152xf32, #tpu.memory_space<smem>>
    %c34 = arith.constant 34 : index
    %34 = memref.load %arg2[%c34] : memref<152xf32, #tpu.memory_space<smem>>
    %c35 = arith.constant 35 : index
    %35 = memref.load %arg2[%c35] : memref<152xf32, #tpu.memory_space<smem>>
    %c36 = arith.constant 36 : index
    %36 = memref.load %arg2[%c36] : memref<152xf32, #tpu.memory_space<smem>>
    %c37 = arith.constant 37 : index
    %37 = memref.load %arg2[%c37] : memref<152xf32, #tpu.memory_space<smem>>
    %c38 = arith.constant 38 : index
    %38 = memref.load %arg2[%c38] : memref<152xf32, #tpu.memory_space<smem>>
    %c39 = arith.constant 39 : index
    %39 = memref.load %arg2[%c39] : memref<152xf32, #tpu.memory_space<smem>>
    %c40 = arith.constant 40 : index
    %40 = memref.load %arg2[%c40] : memref<152xf32, #tpu.memory_space<smem>>
    %c41 = arith.constant 41 : index
    %41 = memref.load %arg2[%c41] : memref<152xf32, #tpu.memory_space<smem>>
    %c42 = arith.constant 42 : index
    %42 = memref.load %arg2[%c42] : memref<152xf32, #tpu.memory_space<smem>>
    %c43 = arith.constant 43 : index
    %43 = memref.load %arg2[%c43] : memref<152xf32, #tpu.memory_space<smem>>
    %c44 = arith.constant 44 : index
    %44 = memref.load %arg2[%c44] : memref<152xf32, #tpu.memory_space<smem>>
    %c45 = arith.constant 45 : index
    %45 = memref.load %arg2[%c45] : memref<152xf32, #tpu.memory_space<smem>>
    %c46 = arith.constant 46 : index
    %46 = memref.load %arg2[%c46] : memref<152xf32, #tpu.memory_space<smem>>
    %c47 = arith.constant 47 : index
    %47 = memref.load %arg2[%c47] : memref<152xf32, #tpu.memory_space<smem>>
    %c48 = arith.constant 48 : index
    %48 = memref.load %arg2[%c48] : memref<152xf32, #tpu.memory_space<smem>>
    %c49 = arith.constant 49 : index
    %49 = memref.load %arg2[%c49] : memref<152xf32, #tpu.memory_space<smem>>
    %c50 = arith.constant 50 : index
    %50 = memref.load %arg2[%c50] : memref<152xf32, #tpu.memory_space<smem>>
    %c51 = arith.constant 51 : index
    %51 = memref.load %arg2[%c51] : memref<152xf32, #tpu.memory_space<smem>>
    %c52 = arith.constant 52 : index
    %52 = memref.load %arg2[%c52] : memref<152xf32, #tpu.memory_space<smem>>
    %c53 = arith.constant 53 : index
    %53 = memref.load %arg2[%c53] : memref<152xf32, #tpu.memory_space<smem>>
    %c54 = arith.constant 54 : index
    %54 = memref.load %arg2[%c54] : memref<152xf32, #tpu.memory_space<smem>>
    %c55 = arith.constant 55 : index
    %55 = memref.load %arg2[%c55] : memref<152xf32, #tpu.memory_space<smem>>
    %c56 = arith.constant 56 : index
    %56 = memref.load %arg2[%c56] : memref<152xf32, #tpu.memory_space<smem>>
    %c57 = arith.constant 57 : index
    %57 = memref.load %arg2[%c57] : memref<152xf32, #tpu.memory_space<smem>>
    %c58 = arith.constant 58 : index
    %58 = memref.load %arg2[%c58] : memref<152xf32, #tpu.memory_space<smem>>
    %c59 = arith.constant 59 : index
    %59 = memref.load %arg2[%c59] : memref<152xf32, #tpu.memory_space<smem>>
    %c60 = arith.constant 60 : index
    %60 = memref.load %arg2[%c60] : memref<152xf32, #tpu.memory_space<smem>>
    %c61 = arith.constant 61 : index
    %61 = memref.load %arg2[%c61] : memref<152xf32, #tpu.memory_space<smem>>
    %c62 = arith.constant 62 : index
    %62 = memref.load %arg2[%c62] : memref<152xf32, #tpu.memory_space<smem>>
    %c63 = arith.constant 63 : index
    %63 = memref.load %arg2[%c63] : memref<152xf32, #tpu.memory_space<smem>>
    %c64 = arith.constant 64 : index
    %64 = memref.load %arg2[%c64] : memref<152xf32, #tpu.memory_space<smem>>
    %c65 = arith.constant 65 : index
    %65 = memref.load %arg2[%c65] : memref<152xf32, #tpu.memory_space<smem>>
    %c66 = arith.constant 66 : index
    %66 = memref.load %arg2[%c66] : memref<152xf32, #tpu.memory_space<smem>>
    %c67 = arith.constant 67 : index
    %67 = memref.load %arg2[%c67] : memref<152xf32, #tpu.memory_space<smem>>
    %c68 = arith.constant 68 : index
    %68 = memref.load %arg2[%c68] : memref<152xf32, #tpu.memory_space<smem>>
    %c69 = arith.constant 69 : index
    %69 = memref.load %arg2[%c69] : memref<152xf32, #tpu.memory_space<smem>>
    %c70 = arith.constant 70 : index
    %70 = memref.load %arg2[%c70] : memref<152xf32, #tpu.memory_space<smem>>
    %c71 = arith.constant 71 : index
    %71 = memref.load %arg2[%c71] : memref<152xf32, #tpu.memory_space<smem>>
    %c72 = arith.constant 72 : index
    %72 = memref.load %arg2[%c72] : memref<152xf32, #tpu.memory_space<smem>>
    %c73 = arith.constant 73 : index
    %73 = memref.load %arg2[%c73] : memref<152xf32, #tpu.memory_space<smem>>
    %c74 = arith.constant 74 : index
    %74 = memref.load %arg2[%c74] : memref<152xf32, #tpu.memory_space<smem>>
    %c75 = arith.constant 75 : index
    %75 = memref.load %arg2[%c75] : memref<152xf32, #tpu.memory_space<smem>>
    %c76 = arith.constant 76 : index
    %76 = memref.load %arg2[%c76] : memref<152xf32, #tpu.memory_space<smem>>
    %c77 = arith.constant 77 : index
    %77 = memref.load %arg2[%c77] : memref<152xf32, #tpu.memory_space<smem>>
    %c78 = arith.constant 78 : index
    %78 = memref.load %arg2[%c78] : memref<152xf32, #tpu.memory_space<smem>>
    %c79 = arith.constant 79 : index
    %79 = memref.load %arg2[%c79] : memref<152xf32, #tpu.memory_space<smem>>
    %c80 = arith.constant 80 : index
    %80 = memref.load %arg2[%c80] : memref<152xf32, #tpu.memory_space<smem>>
    %c81 = arith.constant 81 : index
    %81 = memref.load %arg2[%c81] : memref<152xf32, #tpu.memory_space<smem>>
    %c82 = arith.constant 82 : index
    %82 = memref.load %arg2[%c82] : memref<152xf32, #tpu.memory_space<smem>>
    %c83 = arith.constant 83 : index
    %83 = memref.load %arg2[%c83] : memref<152xf32, #tpu.memory_space<smem>>
    %c84 = arith.constant 84 : index
    %84 = memref.load %arg2[%c84] : memref<152xf32, #tpu.memory_space<smem>>
    %c85 = arith.constant 85 : index
    %85 = memref.load %arg2[%c85] : memref<152xf32, #tpu.memory_space<smem>>
    %c86 = arith.constant 86 : index
    %86 = memref.load %arg2[%c86] : memref<152xf32, #tpu.memory_space<smem>>
    %c87 = arith.constant 87 : index
    %87 = memref.load %arg2[%c87] : memref<152xf32, #tpu.memory_space<smem>>
    %c88 = arith.constant 88 : index
    %88 = memref.load %arg2[%c88] : memref<152xf32, #tpu.memory_space<smem>>
    %c89 = arith.constant 89 : index
    %89 = memref.load %arg2[%c89] : memref<152xf32, #tpu.memory_space<smem>>
    %c90 = arith.constant 90 : index
    %90 = memref.load %arg2[%c90] : memref<152xf32, #tpu.memory_space<smem>>
    %c91 = arith.constant 91 : index
    %91 = memref.load %arg2[%c91] : memref<152xf32, #tpu.memory_space<smem>>
    %c92 = arith.constant 92 : index
    %92 = memref.load %arg2[%c92] : memref<152xf32, #tpu.memory_space<smem>>
    %c93 = arith.constant 93 : index
    %93 = memref.load %arg2[%c93] : memref<152xf32, #tpu.memory_space<smem>>
    %c94 = arith.constant 94 : index
    %94 = memref.load %arg2[%c94] : memref<152xf32, #tpu.memory_space<smem>>
    %c95 = arith.constant 95 : index
    %95 = memref.load %arg2[%c95] : memref<152xf32, #tpu.memory_space<smem>>
    %c96 = arith.constant 96 : index
    %96 = memref.load %arg2[%c96] : memref<152xf32, #tpu.memory_space<smem>>
    %c97 = arith.constant 97 : index
    %97 = memref.load %arg2[%c97] : memref<152xf32, #tpu.memory_space<smem>>
    %c98 = arith.constant 98 : index
    %98 = memref.load %arg2[%c98] : memref<152xf32, #tpu.memory_space<smem>>
    %c99 = arith.constant 99 : index
    %99 = memref.load %arg2[%c99] : memref<152xf32, #tpu.memory_space<smem>>
    %c100 = arith.constant 100 : index
    %100 = memref.load %arg2[%c100] : memref<152xf32, #tpu.memory_space<smem>>
    %c101 = arith.constant 101 : index
    %101 = memref.load %arg2[%c101] : memref<152xf32, #tpu.memory_space<smem>>
    %c102 = arith.constant 102 : index
    %102 = memref.load %arg2[%c102] : memref<152xf32, #tpu.memory_space<smem>>
    %c103 = arith.constant 103 : index
    %103 = memref.load %arg2[%c103] : memref<152xf32, #tpu.memory_space<smem>>
    %c104 = arith.constant 104 : index
    %104 = memref.load %arg2[%c104] : memref<152xf32, #tpu.memory_space<smem>>
    %c105 = arith.constant 105 : index
    %105 = memref.load %arg2[%c105] : memref<152xf32, #tpu.memory_space<smem>>
    %c106 = arith.constant 106 : index
    %106 = memref.load %arg2[%c106] : memref<152xf32, #tpu.memory_space<smem>>
    %c107 = arith.constant 107 : index
    %107 = memref.load %arg2[%c107] : memref<152xf32, #tpu.memory_space<smem>>
    %c108 = arith.constant 108 : index
    %108 = memref.load %arg2[%c108] : memref<152xf32, #tpu.memory_space<smem>>
    %c109 = arith.constant 109 : index
    %109 = memref.load %arg2[%c109] : memref<152xf32, #tpu.memory_space<smem>>
    %c110 = arith.constant 110 : index
    %110 = memref.load %arg2[%c110] : memref<152xf32, #tpu.memory_space<smem>>
    %c111 = arith.constant 111 : index
    %111 = memref.load %arg2[%c111] : memref<152xf32, #tpu.memory_space<smem>>
    %c112 = arith.constant 112 : index
    %112 = memref.load %arg2[%c112] : memref<152xf32, #tpu.memory_space<smem>>
    %c113 = arith.constant 113 : index
    %113 = memref.load %arg2[%c113] : memref<152xf32, #tpu.memory_space<smem>>
    %c114 = arith.constant 114 : index
    %114 = memref.load %arg2[%c114] : memref<152xf32, #tpu.memory_space<smem>>
    %c115 = arith.constant 115 : index
    %115 = memref.load %arg2[%c115] : memref<152xf32, #tpu.memory_space<smem>>
    %c116 = arith.constant 116 : index
    %116 = memref.load %arg2[%c116] : memref<152xf32, #tpu.memory_space<smem>>
    %c117 = arith.constant 117 : index
    %117 = memref.load %arg2[%c117] : memref<152xf32, #tpu.memory_space<smem>>
    %c118 = arith.constant 118 : index
    %118 = memref.load %arg2[%c118] : memref<152xf32, #tpu.memory_space<smem>>
    %c119 = arith.constant 119 : index
    %119 = memref.load %arg2[%c119] : memref<152xf32, #tpu.memory_space<smem>>
    %c120 = arith.constant 120 : index
    %120 = memref.load %arg2[%c120] : memref<152xf32, #tpu.memory_space<smem>>
    %c121 = arith.constant 121 : index
    %121 = memref.load %arg2[%c121] : memref<152xf32, #tpu.memory_space<smem>>
    %c122 = arith.constant 122 : index
    %122 = memref.load %arg2[%c122] : memref<152xf32, #tpu.memory_space<smem>>
    %c123 = arith.constant 123 : index
    %123 = memref.load %arg2[%c123] : memref<152xf32, #tpu.memory_space<smem>>
    %c124 = arith.constant 124 : index
    %124 = memref.load %arg2[%c124] : memref<152xf32, #tpu.memory_space<smem>>
    %c125 = arith.constant 125 : index
    %125 = memref.load %arg2[%c125] : memref<152xf32, #tpu.memory_space<smem>>
    %c126 = arith.constant 126 : index
    %126 = memref.load %arg2[%c126] : memref<152xf32, #tpu.memory_space<smem>>
    %c127 = arith.constant 127 : index
    %127 = memref.load %arg2[%c127] : memref<152xf32, #tpu.memory_space<smem>>
    %c128 = arith.constant 128 : index
    %128 = memref.load %arg2[%c128] : memref<152xf32, #tpu.memory_space<smem>>
    %c129 = arith.constant 129 : index
    %129 = memref.load %arg2[%c129] : memref<152xf32, #tpu.memory_space<smem>>
    %c130 = arith.constant 130 : index
    %130 = memref.load %arg2[%c130] : memref<152xf32, #tpu.memory_space<smem>>
    %c131 = arith.constant 131 : index
    %131 = memref.load %arg2[%c131] : memref<152xf32, #tpu.memory_space<smem>>
    %c132 = arith.constant 132 : index
    %132 = memref.load %arg2[%c132] : memref<152xf32, #tpu.memory_space<smem>>
    %c133 = arith.constant 133 : index
    %133 = memref.load %arg2[%c133] : memref<152xf32, #tpu.memory_space<smem>>
    %c134 = arith.constant 134 : index
    %134 = memref.load %arg2[%c134] : memref<152xf32, #tpu.memory_space<smem>>
    %c135 = arith.constant 135 : index
    %135 = memref.load %arg2[%c135] : memref<152xf32, #tpu.memory_space<smem>>
    %c136 = arith.constant 136 : index
    %136 = memref.load %arg2[%c136] : memref<152xf32, #tpu.memory_space<smem>>
    %c137 = arith.constant 137 : index
    %137 = memref.load %arg2[%c137] : memref<152xf32, #tpu.memory_space<smem>>
    %c138 = arith.constant 138 : index
    %138 = memref.load %arg2[%c138] : memref<152xf32, #tpu.memory_space<smem>>
    %c139 = arith.constant 139 : index
    %139 = memref.load %arg2[%c139] : memref<152xf32, #tpu.memory_space<smem>>
    %c140 = arith.constant 140 : index
    %140 = memref.load %arg2[%c140] : memref<152xf32, #tpu.memory_space<smem>>
    %c141 = arith.constant 141 : index
    %141 = memref.load %arg2[%c141] : memref<152xf32, #tpu.memory_space<smem>>
    %c142 = arith.constant 142 : index
    %142 = memref.load %arg2[%c142] : memref<152xf32, #tpu.memory_space<smem>>
    %c143 = arith.constant 143 : index
    %143 = memref.load %arg2[%c143] : memref<152xf32, #tpu.memory_space<smem>>
    %c144 = arith.constant 144 : index
    %144 = memref.load %arg2[%c144] : memref<152xf32, #tpu.memory_space<smem>>
    %c145 = arith.constant 145 : index
    %145 = memref.load %arg2[%c145] : memref<152xf32, #tpu.memory_space<smem>>
    %c146 = arith.constant 146 : index
    %146 = memref.load %arg2[%c146] : memref<152xf32, #tpu.memory_space<smem>>
    %c147 = arith.constant 147 : index
    %147 = memref.load %arg2[%c147] : memref<152xf32, #tpu.memory_space<smem>>
    %c148 = arith.constant 148 : index
    %148 = memref.load %arg2[%c148] : memref<152xf32, #tpu.memory_space<smem>>
    %c149 = arith.constant 149 : index
    %149 = memref.load %arg2[%c149] : memref<152xf32, #tpu.memory_space<smem>>
    %c150 = arith.constant 150 : index
    %150 = memref.load %arg2[%c150] : memref<152xf32, #tpu.memory_space<smem>>
    %c151 = arith.constant 151 : index
    %151 = memref.load %arg2[%c151] : memref<152xf32, #tpu.memory_space<smem>>
    %c0_i32 = arith.constant 0 : i32
    %c1_i32 = arith.constant 1 : i32
    %152 = arith.muli %c0_i32, %c1_i32 : i32
    %c0_i32_0 = arith.constant 0 : i32
    %153 = arith.addi %c0_i32_0, %152 : i32
    %c16_i32 = arith.constant 16 : i32
    %154 = arith.muli %153, %c16_i32 : i32
    %155 = tpu.assume_multiple %154, 16 : i32
    %156 = arith.index_cast %155 : i32 to index
    %c0_1 = arith.constant 0 : index
    %157 = vector.load %arg1[%156, %c0_1] : memref<16x128xf32, #tpu.memory_space<vmem>>, vector<16x128xf32>
    %158 = vector.broadcast %0 : f32 to vector<16x128xf32>
    %159 = arith.mulf %157, %158 : vector<16x128xf32>
    %160 = vector.broadcast %10 : f32 to vector<16x128xf32>
    %161 = arith.addf %159, %160 : vector<16x128xf32>
    %cst = arith.constant 0.000000e+00 : f32
    %162 = vector.broadcast %cst : f32 to vector<16x128xf32>
    %163 = arith.maximumf %161, %162 : vector<16x128xf32>
    %164 = vector.broadcast %1 : f32 to vector<16x128xf32>
    %165 = arith.mulf %157, %164 : vector<16x128xf32>
    %166 = vector.broadcast %11 : f32 to vector<16x128xf32>
    %167 = arith.addf %165, %166 : vector<16x128xf32>
    %cst_2 = arith.constant 0.000000e+00 : f32
    %168 = vector.broadcast %cst_2 : f32 to vector<16x128xf32>
    %169 = arith.maximumf %167, %168 : vector<16x128xf32>
    %170 = vector.broadcast %2 : f32 to vector<16x128xf32>
    %171 = arith.mulf %157, %170 : vector<16x128xf32>
    %172 = vector.broadcast %12 : f32 to vector<16x128xf32>
    %173 = arith.addf %171, %172 : vector<16x128xf32>
    %cst_3 = arith.constant 0.000000e+00 : f32
    %174 = vector.broadcast %cst_3 : f32 to vector<16x128xf32>
    %175 = arith.maximumf %173, %174 : vector<16x128xf32>
    %176 = vector.broadcast %3 : f32 to vector<16x128xf32>
    %177 = arith.mulf %157, %176 : vector<16x128xf32>
    %178 = vector.broadcast %13 : f32 to vector<16x128xf32>
    %179 = arith.addf %177, %178 : vector<16x128xf32>
    %cst_4 = arith.constant 0.000000e+00 : f32
    %180 = vector.broadcast %cst_4 : f32 to vector<16x128xf32>
    %181 = arith.maximumf %179, %180 : vector<16x128xf32>
    %182 = vector.broadcast %4 : f32 to vector<16x128xf32>
    %183 = arith.mulf %157, %182 : vector<16x128xf32>
    %184 = vector.broadcast %14 : f32 to vector<16x128xf32>
    %185 = arith.addf %183, %184 : vector<16x128xf32>
    %cst_5 = arith.constant 0.000000e+00 : f32
    %186 = vector.broadcast %cst_5 : f32 to vector<16x128xf32>
    %187 = arith.maximumf %185, %186 : vector<16x128xf32>
    %188 = vector.broadcast %5 : f32 to vector<16x128xf32>
    %189 = arith.mulf %157, %188 : vector<16x128xf32>
    %190 = vector.broadcast %15 : f32 to vector<16x128xf32>
    %191 = arith.addf %189, %190 : vector<16x128xf32>
    %cst_6 = arith.constant 0.000000e+00 : f32
    %192 = vector.broadcast %cst_6 : f32 to vector<16x128xf32>
    %193 = arith.maximumf %191, %192 : vector<16x128xf32>
    %194 = vector.broadcast %6 : f32 to vector<16x128xf32>
    %195 = arith.mulf %157, %194 : vector<16x128xf32>
    %196 = vector.broadcast %16 : f32 to vector<16x128xf32>
    %197 = arith.addf %195, %196 : vector<16x128xf32>
    %cst_7 = arith.constant 0.000000e+00 : f32
    %198 = vector.broadcast %cst_7 : f32 to vector<16x128xf32>
    %199 = arith.maximumf %197, %198 : vector<16x128xf32>
    %200 = vector.broadcast %7 : f32 to vector<16x128xf32>
    %201 = arith.mulf %157, %200 : vector<16x128xf32>
    %202 = vector.broadcast %17 : f32 to vector<16x128xf32>
    %203 = arith.addf %201, %202 : vector<16x128xf32>
    %cst_8 = arith.constant 0.000000e+00 : f32
    %204 = vector.broadcast %cst_8 : f32 to vector<16x128xf32>
    %205 = arith.maximumf %203, %204 : vector<16x128xf32>
    %206 = vector.broadcast %8 : f32 to vector<16x128xf32>
    %207 = arith.mulf %157, %206 : vector<16x128xf32>
    %208 = vector.broadcast %18 : f32 to vector<16x128xf32>
    %209 = arith.addf %207, %208 : vector<16x128xf32>
    %cst_9 = arith.constant 0.000000e+00 : f32
    %210 = vector.broadcast %cst_9 : f32 to vector<16x128xf32>
    %211 = arith.maximumf %209, %210 : vector<16x128xf32>
    %212 = vector.broadcast %9 : f32 to vector<16x128xf32>
    %213 = arith.mulf %157, %212 : vector<16x128xf32>
    %214 = vector.broadcast %19 : f32 to vector<16x128xf32>
    %215 = arith.addf %213, %214 : vector<16x128xf32>
    %cst_10 = arith.constant 0.000000e+00 : f32
    %216 = vector.broadcast %cst_10 : f32 to vector<16x128xf32>
    %217 = arith.maximumf %215, %216 : vector<16x128xf32>
    %218 = vector.broadcast %20 : f32 to vector<16x128xf32>
    %219 = arith.mulf %163, %218 : vector<16x128xf32>
    %220 = vector.broadcast %30 : f32 to vector<16x128xf32>
    %221 = arith.mulf %169, %220 : vector<16x128xf32>
    %222 = arith.addf %219, %221 : vector<16x128xf32>
    %223 = vector.broadcast %40 : f32 to vector<16x128xf32>
    %224 = arith.mulf %175, %223 : vector<16x128xf32>
    %225 = arith.addf %222, %224 : vector<16x128xf32>
    %226 = vector.broadcast %50 : f32 to vector<16x128xf32>
    %227 = arith.mulf %181, %226 : vector<16x128xf32>
    %228 = arith.addf %225, %227 : vector<16x128xf32>
    %229 = vector.broadcast %60 : f32 to vector<16x128xf32>
    %230 = arith.mulf %187, %229 : vector<16x128xf32>
    %231 = arith.addf %228, %230 : vector<16x128xf32>
    %232 = vector.broadcast %70 : f32 to vector<16x128xf32>
    %233 = arith.mulf %193, %232 : vector<16x128xf32>
    %234 = arith.addf %231, %233 : vector<16x128xf32>
    %235 = vector.broadcast %80 : f32 to vector<16x128xf32>
    %236 = arith.mulf %199, %235 : vector<16x128xf32>
    %237 = arith.addf %234, %236 : vector<16x128xf32>
    %238 = vector.broadcast %90 : f32 to vector<16x128xf32>
    %239 = arith.mulf %205, %238 : vector<16x128xf32>
    %240 = arith.addf %237, %239 : vector<16x128xf32>
    %241 = vector.broadcast %100 : f32 to vector<16x128xf32>
    %242 = arith.mulf %211, %241 : vector<16x128xf32>
    %243 = arith.addf %240, %242 : vector<16x128xf32>
    %244 = vector.broadcast %110 : f32 to vector<16x128xf32>
    %245 = arith.mulf %217, %244 : vector<16x128xf32>
    %246 = arith.addf %243, %245 : vector<16x128xf32>
    %247 = vector.broadcast %120 : f32 to vector<16x128xf32>
    %248 = arith.addf %246, %247 : vector<16x128xf32>
    %cst_11 = arith.constant 0.000000e+00 : f32
    %249 = vector.broadcast %cst_11 : f32 to vector<16x128xf32>
    %250 = arith.maximumf %248, %249 : vector<16x128xf32>
    %251 = vector.broadcast %21 : f32 to vector<16x128xf32>
    %252 = arith.mulf %163, %251 : vector<16x128xf32>
    %253 = vector.broadcast %31 : f32 to vector<16x128xf32>
    %254 = arith.mulf %169, %253 : vector<16x128xf32>
    %255 = arith.addf %252, %254 : vector<16x128xf32>
    %256 = vector.broadcast %41 : f32 to vector<16x128xf32>
    %257 = arith.mulf %175, %256 : vector<16x128xf32>
    %258 = arith.addf %255, %257 : vector<16x128xf32>
    %259 = vector.broadcast %51 : f32 to vector<16x128xf32>
    %260 = arith.mulf %181, %259 : vector<16x128xf32>
    %261 = arith.addf %258, %260 : vector<16x128xf32>
    %262 = vector.broadcast %61 : f32 to vector<16x128xf32>
    %263 = arith.mulf %187, %262 : vector<16x128xf32>
    %264 = arith.addf %261, %263 : vector<16x128xf32>
    %265 = vector.broadcast %71 : f32 to vector<16x128xf32>
    %266 = arith.mulf %193, %265 : vector<16x128xf32>
    %267 = arith.addf %264, %266 : vector<16x128xf32>
    %268 = vector.broadcast %81 : f32 to vector<16x128xf32>
    %269 = arith.mulf %199, %268 : vector<16x128xf32>
    %270 = arith.addf %267, %269 : vector<16x128xf32>
    %271 = vector.broadcast %91 : f32 to vector<16x128xf32>
    %272 = arith.mulf %205, %271 : vector<16x128xf32>
    %273 = arith.addf %270, %272 : vector<16x128xf32>
    %274 = vector.broadcast %101 : f32 to vector<16x128xf32>
    %275 = arith.mulf %211, %274 : vector<16x128xf32>
    %276 = arith.addf %273, %275 : vector<16x128xf32>
    %277 = vector.broadcast %111 : f32 to vector<16x128xf32>
    %278 = arith.mulf %217, %277 : vector<16x128xf32>
    %279 = arith.addf %276, %278 : vector<16x128xf32>
    %280 = vector.broadcast %121 : f32 to vector<16x128xf32>
    %281 = arith.addf %279, %280 : vector<16x128xf32>
    %cst_12 = arith.constant 0.000000e+00 : f32
    %282 = vector.broadcast %cst_12 : f32 to vector<16x128xf32>
    %283 = arith.maximumf %281, %282 : vector<16x128xf32>
    %284 = vector.broadcast %22 : f32 to vector<16x128xf32>
    %285 = arith.mulf %163, %284 : vector<16x128xf32>
    %286 = vector.broadcast %32 : f32 to vector<16x128xf32>
    %287 = arith.mulf %169, %286 : vector<16x128xf32>
    %288 = arith.addf %285, %287 : vector<16x128xf32>
    %289 = vector.broadcast %42 : f32 to vector<16x128xf32>
    %290 = arith.mulf %175, %289 : vector<16x128xf32>
    %291 = arith.addf %288, %290 : vector<16x128xf32>
    %292 = vector.broadcast %52 : f32 to vector<16x128xf32>
    %293 = arith.mulf %181, %292 : vector<16x128xf32>
    %294 = arith.addf %291, %293 : vector<16x128xf32>
    %295 = vector.broadcast %62 : f32 to vector<16x128xf32>
    %296 = arith.mulf %187, %295 : vector<16x128xf32>
    %297 = arith.addf %294, %296 : vector<16x128xf32>
    %298 = vector.broadcast %72 : f32 to vector<16x128xf32>
    %299 = arith.mulf %193, %298 : vector<16x128xf32>
    %300 = arith.addf %297, %299 : vector<16x128xf32>
    %301 = vector.broadcast %82 : f32 to vector<16x128xf32>
    %302 = arith.mulf %199, %301 : vector<16x128xf32>
    %303 = arith.addf %300, %302 : vector<16x128xf32>
    %304 = vector.broadcast %92 : f32 to vector<16x128xf32>
    %305 = arith.mulf %205, %304 : vector<16x128xf32>
    %306 = arith.addf %303, %305 : vector<16x128xf32>
    %307 = vector.broadcast %102 : f32 to vector<16x128xf32>
    %308 = arith.mulf %211, %307 : vector<16x128xf32>
    %309 = arith.addf %306, %308 : vector<16x128xf32>
    %310 = vector.broadcast %112 : f32 to vector<16x128xf32>
    %311 = arith.mulf %217, %310 : vector<16x128xf32>
    %312 = arith.addf %309, %311 : vector<16x128xf32>
    %313 = vector.broadcast %122 : f32 to vector<16x128xf32>
    %314 = arith.addf %312, %313 : vector<16x128xf32>
    %cst_13 = arith.constant 0.000000e+00 : f32
    %315 = vector.broadcast %cst_13 : f32 to vector<16x128xf32>
    %316 = arith.maximumf %314, %315 : vector<16x128xf32>
    %317 = vector.broadcast %23 : f32 to vector<16x128xf32>
    %318 = arith.mulf %163, %317 : vector<16x128xf32>
    %319 = vector.broadcast %33 : f32 to vector<16x128xf32>
    %320 = arith.mulf %169, %319 : vector<16x128xf32>
    %321 = arith.addf %318, %320 : vector<16x128xf32>
    %322 = vector.broadcast %43 : f32 to vector<16x128xf32>
    %323 = arith.mulf %175, %322 : vector<16x128xf32>
    %324 = arith.addf %321, %323 : vector<16x128xf32>
    %325 = vector.broadcast %53 : f32 to vector<16x128xf32>
    %326 = arith.mulf %181, %325 : vector<16x128xf32>
    %327 = arith.addf %324, %326 : vector<16x128xf32>
    %328 = vector.broadcast %63 : f32 to vector<16x128xf32>
    %329 = arith.mulf %187, %328 : vector<16x128xf32>
    %330 = arith.addf %327, %329 : vector<16x128xf32>
    %331 = vector.broadcast %73 : f32 to vector<16x128xf32>
    %332 = arith.mulf %193, %331 : vector<16x128xf32>
    %333 = arith.addf %330, %332 : vector<16x128xf32>
    %334 = vector.broadcast %83 : f32 to vector<16x128xf32>
    %335 = arith.mulf %199, %334 : vector<16x128xf32>
    %336 = arith.addf %333, %335 : vector<16x128xf32>
    %337 = vector.broadcast %93 : f32 to vector<16x128xf32>
    %338 = arith.mulf %205, %337 : vector<16x128xf32>
    %339 = arith.addf %336, %338 : vector<16x128xf32>
    %340 = vector.broadcast %103 : f32 to vector<16x128xf32>
    %341 = arith.mulf %211, %340 : vector<16x128xf32>
    %342 = arith.addf %339, %341 : vector<16x128xf32>
    %343 = vector.broadcast %113 : f32 to vector<16x128xf32>
    %344 = arith.mulf %217, %343 : vector<16x128xf32>
    %345 = arith.addf %342, %344 : vector<16x128xf32>
    %346 = vector.broadcast %123 : f32 to vector<16x128xf32>
    %347 = arith.addf %345, %346 : vector<16x128xf32>
    %cst_14 = arith.constant 0.000000e+00 : f32
    %348 = vector.broadcast %cst_14 : f32 to vector<16x128xf32>
    %349 = arith.maximumf %347, %348 : vector<16x128xf32>
    %350 = vector.broadcast %24 : f32 to vector<16x128xf32>
    %351 = arith.mulf %163, %350 : vector<16x128xf32>
    %352 = vector.broadcast %34 : f32 to vector<16x128xf32>
    %353 = arith.mulf %169, %352 : vector<16x128xf32>
    %354 = arith.addf %351, %353 : vector<16x128xf32>
    %355 = vector.broadcast %44 : f32 to vector<16x128xf32>
    %356 = arith.mulf %175, %355 : vector<16x128xf32>
    %357 = arith.addf %354, %356 : vector<16x128xf32>
    %358 = vector.broadcast %54 : f32 to vector<16x128xf32>
    %359 = arith.mulf %181, %358 : vector<16x128xf32>
    %360 = arith.addf %357, %359 : vector<16x128xf32>
    %361 = vector.broadcast %64 : f32 to vector<16x128xf32>
    %362 = arith.mulf %187, %361 : vector<16x128xf32>
    %363 = arith.addf %360, %362 : vector<16x128xf32>
    %364 = vector.broadcast %74 : f32 to vector<16x128xf32>
    %365 = arith.mulf %193, %364 : vector<16x128xf32>
    %366 = arith.addf %363, %365 : vector<16x128xf32>
    %367 = vector.broadcast %84 : f32 to vector<16x128xf32>
    %368 = arith.mulf %199, %367 : vector<16x128xf32>
    %369 = arith.addf %366, %368 : vector<16x128xf32>
    %370 = vector.broadcast %94 : f32 to vector<16x128xf32>
    %371 = arith.mulf %205, %370 : vector<16x128xf32>
    %372 = arith.addf %369, %371 : vector<16x128xf32>
    %373 = vector.broadcast %104 : f32 to vector<16x128xf32>
    %374 = arith.mulf %211, %373 : vector<16x128xf32>
    %375 = arith.addf %372, %374 : vector<16x128xf32>
    %376 = vector.broadcast %114 : f32 to vector<16x128xf32>
    %377 = arith.mulf %217, %376 : vector<16x128xf32>
    %378 = arith.addf %375, %377 : vector<16x128xf32>
    %379 = vector.broadcast %124 : f32 to vector<16x128xf32>
    %380 = arith.addf %378, %379 : vector<16x128xf32>
    %cst_15 = arith.constant 0.000000e+00 : f32
    %381 = vector.broadcast %cst_15 : f32 to vector<16x128xf32>
    %382 = arith.maximumf %380, %381 : vector<16x128xf32>
    %383 = vector.broadcast %25 : f32 to vector<16x128xf32>
    %384 = arith.mulf %163, %383 : vector<16x128xf32>
    %385 = vector.broadcast %35 : f32 to vector<16x128xf32>
    %386 = arith.mulf %169, %385 : vector<16x128xf32>
    %387 = arith.addf %384, %386 : vector<16x128xf32>
    %388 = vector.broadcast %45 : f32 to vector<16x128xf32>
    %389 = arith.mulf %175, %388 : vector<16x128xf32>
    %390 = arith.addf %387, %389 : vector<16x128xf32>
    %391 = vector.broadcast %55 : f32 to vector<16x128xf32>
    %392 = arith.mulf %181, %391 : vector<16x128xf32>
    %393 = arith.addf %390, %392 : vector<16x128xf32>
    %394 = vector.broadcast %65 : f32 to vector<16x128xf32>
    %395 = arith.mulf %187, %394 : vector<16x128xf32>
    %396 = arith.addf %393, %395 : vector<16x128xf32>
    %397 = vector.broadcast %75 : f32 to vector<16x128xf32>
    %398 = arith.mulf %193, %397 : vector<16x128xf32>
    %399 = arith.addf %396, %398 : vector<16x128xf32>
    %400 = vector.broadcast %85 : f32 to vector<16x128xf32>
    %401 = arith.mulf %199, %400 : vector<16x128xf32>
    %402 = arith.addf %399, %401 : vector<16x128xf32>
    %403 = vector.broadcast %95 : f32 to vector<16x128xf32>
    %404 = arith.mulf %205, %403 : vector<16x128xf32>
    %405 = arith.addf %402, %404 : vector<16x128xf32>
    %406 = vector.broadcast %105 : f32 to vector<16x128xf32>
    %407 = arith.mulf %211, %406 : vector<16x128xf32>
    %408 = arith.addf %405, %407 : vector<16x128xf32>
    %409 = vector.broadcast %115 : f32 to vector<16x128xf32>
    %410 = arith.mulf %217, %409 : vector<16x128xf32>
    %411 = arith.addf %408, %410 : vector<16x128xf32>
    %412 = vector.broadcast %125 : f32 to vector<16x128xf32>
    %413 = arith.addf %411, %412 : vector<16x128xf32>
    %cst_16 = arith.constant 0.000000e+00 : f32
    %414 = vector.broadcast %cst_16 : f32 to vector<16x128xf32>
    %415 = arith.maximumf %413, %414 : vector<16x128xf32>
    %416 = vector.broadcast %26 : f32 to vector<16x128xf32>
    %417 = arith.mulf %163, %416 : vector<16x128xf32>
    %418 = vector.broadcast %36 : f32 to vector<16x128xf32>
    %419 = arith.mulf %169, %418 : vector<16x128xf32>
    %420 = arith.addf %417, %419 : vector<16x128xf32>
    %421 = vector.broadcast %46 : f32 to vector<16x128xf32>
    %422 = arith.mulf %175, %421 : vector<16x128xf32>
    %423 = arith.addf %420, %422 : vector<16x128xf32>
    %424 = vector.broadcast %56 : f32 to vector<16x128xf32>
    %425 = arith.mulf %181, %424 : vector<16x128xf32>
    %426 = arith.addf %423, %425 : vector<16x128xf32>
    %427 = vector.broadcast %66 : f32 to vector<16x128xf32>
    %428 = arith.mulf %187, %427 : vector<16x128xf32>
    %429 = arith.addf %426, %428 : vector<16x128xf32>
    %430 = vector.broadcast %76 : f32 to vector<16x128xf32>
    %431 = arith.mulf %193, %430 : vector<16x128xf32>
    %432 = arith.addf %429, %431 : vector<16x128xf32>
    %433 = vector.broadcast %86 : f32 to vector<16x128xf32>
    %434 = arith.mulf %199, %433 : vector<16x128xf32>
    %435 = arith.addf %432, %434 : vector<16x128xf32>
    %436 = vector.broadcast %96 : f32 to vector<16x128xf32>
    %437 = arith.mulf %205, %436 : vector<16x128xf32>
    %438 = arith.addf %435, %437 : vector<16x128xf32>
    %439 = vector.broadcast %106 : f32 to vector<16x128xf32>
    %440 = arith.mulf %211, %439 : vector<16x128xf32>
    %441 = arith.addf %438, %440 : vector<16x128xf32>
    %442 = vector.broadcast %116 : f32 to vector<16x128xf32>
    %443 = arith.mulf %217, %442 : vector<16x128xf32>
    %444 = arith.addf %441, %443 : vector<16x128xf32>
    %445 = vector.broadcast %126 : f32 to vector<16x128xf32>
    %446 = arith.addf %444, %445 : vector<16x128xf32>
    %cst_17 = arith.constant 0.000000e+00 : f32
    %447 = vector.broadcast %cst_17 : f32 to vector<16x128xf32>
    %448 = arith.maximumf %446, %447 : vector<16x128xf32>
    %449 = vector.broadcast %27 : f32 to vector<16x128xf32>
    %450 = arith.mulf %163, %449 : vector<16x128xf32>
    %451 = vector.broadcast %37 : f32 to vector<16x128xf32>
    %452 = arith.mulf %169, %451 : vector<16x128xf32>
    %453 = arith.addf %450, %452 : vector<16x128xf32>
    %454 = vector.broadcast %47 : f32 to vector<16x128xf32>
    %455 = arith.mulf %175, %454 : vector<16x128xf32>
    %456 = arith.addf %453, %455 : vector<16x128xf32>
    %457 = vector.broadcast %57 : f32 to vector<16x128xf32>
    %458 = arith.mulf %181, %457 : vector<16x128xf32>
    %459 = arith.addf %456, %458 : vector<16x128xf32>
    %460 = vector.broadcast %67 : f32 to vector<16x128xf32>
    %461 = arith.mulf %187, %460 : vector<16x128xf32>
    %462 = arith.addf %459, %461 : vector<16x128xf32>
    %463 = vector.broadcast %77 : f32 to vector<16x128xf32>
    %464 = arith.mulf %193, %463 : vector<16x128xf32>
    %465 = arith.addf %462, %464 : vector<16x128xf32>
    %466 = vector.broadcast %87 : f32 to vector<16x128xf32>
    %467 = arith.mulf %199, %466 : vector<16x128xf32>
    %468 = arith.addf %465, %467 : vector<16x128xf32>
    %469 = vector.broadcast %97 : f32 to vector<16x128xf32>
    %470 = arith.mulf %205, %469 : vector<16x128xf32>
    %471 = arith.addf %468, %470 : vector<16x128xf32>
    %472 = vector.broadcast %107 : f32 to vector<16x128xf32>
    %473 = arith.mulf %211, %472 : vector<16x128xf32>
    %474 = arith.addf %471, %473 : vector<16x128xf32>
    %475 = vector.broadcast %117 : f32 to vector<16x128xf32>
    %476 = arith.mulf %217, %475 : vector<16x128xf32>
    %477 = arith.addf %474, %476 : vector<16x128xf32>
    %478 = vector.broadcast %127 : f32 to vector<16x128xf32>
    %479 = arith.addf %477, %478 : vector<16x128xf32>
    %cst_18 = arith.constant 0.000000e+00 : f32
    %480 = vector.broadcast %cst_18 : f32 to vector<16x128xf32>
    %481 = arith.maximumf %479, %480 : vector<16x128xf32>
    %482 = vector.broadcast %28 : f32 to vector<16x128xf32>
    %483 = arith.mulf %163, %482 : vector<16x128xf32>
    %484 = vector.broadcast %38 : f32 to vector<16x128xf32>
    %485 = arith.mulf %169, %484 : vector<16x128xf32>
    %486 = arith.addf %483, %485 : vector<16x128xf32>
    %487 = vector.broadcast %48 : f32 to vector<16x128xf32>
    %488 = arith.mulf %175, %487 : vector<16x128xf32>
    %489 = arith.addf %486, %488 : vector<16x128xf32>
    %490 = vector.broadcast %58 : f32 to vector<16x128xf32>
    %491 = arith.mulf %181, %490 : vector<16x128xf32>
    %492 = arith.addf %489, %491 : vector<16x128xf32>
    %493 = vector.broadcast %68 : f32 to vector<16x128xf32>
    %494 = arith.mulf %187, %493 : vector<16x128xf32>
    %495 = arith.addf %492, %494 : vector<16x128xf32>
    %496 = vector.broadcast %78 : f32 to vector<16x128xf32>
    %497 = arith.mulf %193, %496 : vector<16x128xf32>
    %498 = arith.addf %495, %497 : vector<16x128xf32>
    %499 = vector.broadcast %88 : f32 to vector<16x128xf32>
    %500 = arith.mulf %199, %499 : vector<16x128xf32>
    %501 = arith.addf %498, %500 : vector<16x128xf32>
    %502 = vector.broadcast %98 : f32 to vector<16x128xf32>
    %503 = arith.mulf %205, %502 : vector<16x128xf32>
    %504 = arith.addf %501, %503 : vector<16x128xf32>
    %505 = vector.broadcast %108 : f32 to vector<16x128xf32>
    %506 = arith.mulf %211, %505 : vector<16x128xf32>
    %507 = arith.addf %504, %506 : vector<16x128xf32>
    %508 = vector.broadcast %118 : f32 to vector<16x128xf32>
    %509 = arith.mulf %217, %508 : vector<16x128xf32>
    %510 = arith.addf %507, %509 : vector<16x128xf32>
    %511 = vector.broadcast %128 : f32 to vector<16x128xf32>
    %512 = arith.addf %510, %511 : vector<16x128xf32>
    %cst_19 = arith.constant 0.000000e+00 : f32
    %513 = vector.broadcast %cst_19 : f32 to vector<16x128xf32>
    %514 = arith.maximumf %512, %513 : vector<16x128xf32>
    %515 = vector.broadcast %29 : f32 to vector<16x128xf32>
    %516 = arith.mulf %163, %515 : vector<16x128xf32>
    %517 = vector.broadcast %39 : f32 to vector<16x128xf32>
    %518 = arith.mulf %169, %517 : vector<16x128xf32>
    %519 = arith.addf %516, %518 : vector<16x128xf32>
    %520 = vector.broadcast %49 : f32 to vector<16x128xf32>
    %521 = arith.mulf %175, %520 : vector<16x128xf32>
    %522 = arith.addf %519, %521 : vector<16x128xf32>
    %523 = vector.broadcast %59 : f32 to vector<16x128xf32>
    %524 = arith.mulf %181, %523 : vector<16x128xf32>
    %525 = arith.addf %522, %524 : vector<16x128xf32>
    %526 = vector.broadcast %69 : f32 to vector<16x128xf32>
    %527 = arith.mulf %187, %526 : vector<16x128xf32>
    %528 = arith.addf %525, %527 : vector<16x128xf32>
    %529 = vector.broadcast %79 : f32 to vector<16x128xf32>
    %530 = arith.mulf %193, %529 : vector<16x128xf32>
    %531 = arith.addf %528, %530 : vector<16x128xf32>
    %532 = vector.broadcast %89 : f32 to vector<16x128xf32>
    %533 = arith.mulf %199, %532 : vector<16x128xf32>
    %534 = arith.addf %531, %533 : vector<16x128xf32>
    %535 = vector.broadcast %99 : f32 to vector<16x128xf32>
    %536 = arith.mulf %205, %535 : vector<16x128xf32>
    %537 = arith.addf %534, %536 : vector<16x128xf32>
    %538 = vector.broadcast %109 : f32 to vector<16x128xf32>
    %539 = arith.mulf %211, %538 : vector<16x128xf32>
    %540 = arith.addf %537, %539 : vector<16x128xf32>
    %541 = vector.broadcast %119 : f32 to vector<16x128xf32>
    %542 = arith.mulf %217, %541 : vector<16x128xf32>
    %543 = arith.addf %540, %542 : vector<16x128xf32>
    %544 = vector.broadcast %129 : f32 to vector<16x128xf32>
    %545 = arith.addf %543, %544 : vector<16x128xf32>
    %cst_20 = arith.constant 0.000000e+00 : f32
    %546 = vector.broadcast %cst_20 : f32 to vector<16x128xf32>
    %547 = arith.maximumf %545, %546 : vector<16x128xf32>
    %548 = vector.broadcast %130 : f32 to vector<16x128xf32>
    %549 = arith.mulf %250, %548 : vector<16x128xf32>
    %550 = vector.broadcast %140 : f32 to vector<16x128xf32>
    %551 = arith.mulf %250, %550 : vector<16x128xf32>
    %552 = vector.broadcast %131 : f32 to vector<16x128xf32>
    %553 = arith.mulf %283, %552 : vector<16x128xf32>
    %554 = arith.addf %549, %553 : vector<16x128xf32>
    %555 = vector.broadcast %141 : f32 to vector<16x128xf32>
    %556 = arith.mulf %283, %555 : vector<16x128xf32>
    %557 = arith.addf %551, %556 : vector<16x128xf32>
    %558 = vector.broadcast %132 : f32 to vector<16x128xf32>
    %559 = arith.mulf %316, %558 : vector<16x128xf32>
    %560 = arith.addf %554, %559 : vector<16x128xf32>
    %561 = vector.broadcast %142 : f32 to vector<16x128xf32>
    %562 = arith.mulf %316, %561 : vector<16x128xf32>
    %563 = arith.addf %557, %562 : vector<16x128xf32>
    %564 = vector.broadcast %133 : f32 to vector<16x128xf32>
    %565 = arith.mulf %349, %564 : vector<16x128xf32>
    %566 = arith.addf %560, %565 : vector<16x128xf32>
    %567 = vector.broadcast %143 : f32 to vector<16x128xf32>
    %568 = arith.mulf %349, %567 : vector<16x128xf32>
    %569 = arith.addf %563, %568 : vector<16x128xf32>
    %570 = vector.broadcast %134 : f32 to vector<16x128xf32>
    %571 = arith.mulf %382, %570 : vector<16x128xf32>
    %572 = arith.addf %566, %571 : vector<16x128xf32>
    %573 = vector.broadcast %144 : f32 to vector<16x128xf32>
    %574 = arith.mulf %382, %573 : vector<16x128xf32>
    %575 = arith.addf %569, %574 : vector<16x128xf32>
    %576 = vector.broadcast %135 : f32 to vector<16x128xf32>
    %577 = arith.mulf %415, %576 : vector<16x128xf32>
    %578 = arith.addf %572, %577 : vector<16x128xf32>
    %579 = vector.broadcast %145 : f32 to vector<16x128xf32>
    %580 = arith.mulf %415, %579 : vector<16x128xf32>
    %581 = arith.addf %575, %580 : vector<16x128xf32>
    %582 = vector.broadcast %136 : f32 to vector<16x128xf32>
    %583 = arith.mulf %448, %582 : vector<16x128xf32>
    %584 = arith.addf %578, %583 : vector<16x128xf32>
    %585 = vector.broadcast %146 : f32 to vector<16x128xf32>
    %586 = arith.mulf %448, %585 : vector<16x128xf32>
    %587 = arith.addf %581, %586 : vector<16x128xf32>
    %588 = vector.broadcast %137 : f32 to vector<16x128xf32>
    %589 = arith.mulf %481, %588 : vector<16x128xf32>
    %590 = arith.addf %584, %589 : vector<16x128xf32>
    %591 = vector.broadcast %147 : f32 to vector<16x128xf32>
    %592 = arith.mulf %481, %591 : vector<16x128xf32>
    %593 = arith.addf %587, %592 : vector<16x128xf32>
    %594 = vector.broadcast %138 : f32 to vector<16x128xf32>
    %595 = arith.mulf %514, %594 : vector<16x128xf32>
    %596 = arith.addf %590, %595 : vector<16x128xf32>
    %597 = vector.broadcast %148 : f32 to vector<16x128xf32>
    %598 = arith.mulf %514, %597 : vector<16x128xf32>
    %599 = arith.addf %593, %598 : vector<16x128xf32>
    %600 = vector.broadcast %139 : f32 to vector<16x128xf32>
    %601 = arith.mulf %547, %600 : vector<16x128xf32>
    %602 = arith.addf %596, %601 : vector<16x128xf32>
    %603 = vector.broadcast %149 : f32 to vector<16x128xf32>
    %604 = arith.mulf %547, %603 : vector<16x128xf32>
    %605 = arith.addf %599, %604 : vector<16x128xf32>
    %606 = vector.broadcast %150 : f32 to vector<16x128xf32>
    %607 = arith.addf %602, %606 : vector<16x128xf32>
    %608 = arith.index_cast %155 : i32 to index
    %c0_21 = arith.constant 0 : index
    %609 = vector.load %arg3[%608, %c0_21] : memref<16x128xf32, #tpu.memory_space<vmem>>, vector<16x128xf32>
    tpu.vector_store %arg3[%608, %c0_21], %607 {strides = array<i32>} : memref<16x128xf32, #tpu.memory_space<vmem>>, vector<16x128xf32>,
    %610 = vector.broadcast %151 : f32 to vector<16x128xf32>
    %611 = arith.addf %605, %610 : vector<16x128xf32>
    %612 = math.exp %611 : vector<16x128xf32>
    %613 = arith.index_cast %155 : i32 to index
    %c0_22 = arith.constant 0 : index
    %614 = vector.load %arg4[%613, %c0_22] : memref<16x128xf32, #tpu.memory_space<vmem>>, vector<16x128xf32>
    tpu.vector_store %arg4[%613, %c0_22], %612 {strides = array<i32>} : memref<16x128xf32, #tpu.memory_space<vmem>>, vector<16x128xf32>,
    %c1_i32_23 = arith.constant 1 : i32
    return
  }
  func.func @transform_0(%arg0: i32) -> (i32, i32) {
    %c0_i32 = arith.constant 0 : i32
    %c0_i32_0 = arith.constant 0 : i32
    return %arg0, %c0_i32 : i32, i32
  }
  func.func @transform_1(%arg0: i32) -> i32 {
    %c0_i32 = arith.constant 0 : i32
    %c0_i32_0 = arith.constant 0 : i32
    return %c0_i32 : i32
  }
  func.func @transform_2(%arg0: i32) -> (i32, i32) {
    %c0_i32 = arith.constant 0 : i32
    %c0_i32_0 = arith.constant 0 : i32
    return %arg0, %c0_i32 : i32, i32
  }
  func.func @transform_3(%arg0: i32) -> (i32, i32) {
    %c0_i32 = arith.constant 0 : i32
    %c0_i32_0 = arith.constant 0 : i32
    return %arg0, %c0_i32 : i32, i32
  }
}

</mosaic_0001>

<llo_original>
// kernel: tpu_custom_call.1
$region0: #{tpu_custom_call.1}
  #allocation0 [shape = 'u32[]', space=smem, size = 0x4, offset = 0x4, fixed_abs, tag = 'smem constant byte address 0x4 - core index']
  #allocation1 [shape = 'u32[144,128]{1,0:T(1,128)}', space=vmem, size = 0x12000, scoped, tag = 'internal scratch']
  %s0 = inlined_call_operand.hbm [shape: f32[16,128], index: 0, kind: input, shape index: {}]
  %s1 = inlined_call_operand.vmem [shape: f32[152], index: 1, kind: input, shape index: {}]
  %s2 = inlined_call_operand.hbm [shape: f32[16,128], index: 2, kind: output, shape index: {0}]
  %s3 = inlined_call_operand.hbm [shape: f32[16,128], index: 3, kind: output, shape index: {1}]
  %4 = xla_tuple %s2, %s3
  %s5 = sld [smem:[#allocation0]]
  $region34: #{tpu_custom_call.1} parent=0
    _
  %s7 = ssub.s32 1, %s5
  %s8 = scalar_select 0, %s7, %s5
  $region1: #{tpu_custom_call.1} parent=0
    #allocation2 [shape = 'u8[8192]{0}', space=vmem, size = 0x2000, scoped, tag = 'input window, operand 0, single buffered']
    #allocation3 [shape = 's32[1]{0}', space=sflag, size = 0x4, scoped, tag = 'scoped memory for tpu_custom_call.1']
    #allocation4 [shape = 's32[1]{0}', space=sflag, size = 0x4, scoped, tag = 'scoped memory for tpu_custom_call.1']
    #allocation5 [shape = 's32[1]{0}', space=sflag, size = 0x4, scoped, tag = 'scoped memory for tpu_custom_call.1']
    #allocation6 [shape = 'u8[1024]{0}', space=smem, size = 0x400, scoped, tag = 'input window, operand 1, single buffered']
    #allocation7 [shape = 'u8[8192]{0}', space=vmem, size = 0x2000, scoped, tag = 'output window, operand 0, single buffered']
    #allocation8 [shape = 'u8[8192]{0}', space=vmem, size = 0x2000, scoped, tag = 'output window, operand 1, single buffered']
    #allocation9 [shape = 's32[1]{0}', space=sflag, size = 0x4, scoped, tag = 'scoped memory for tpu_custom_call.1']
    %9 = vsyncpa [#allocation3], 0
    %10 = vsyncpa [#allocation5], 0
    %11 = vsyncpa [#allocation4], 0
    %12 = vsyncpa [#allocation9], 0
    // Predicated region
    $region2: #{tpu_custom_call.1} parent=1 // pred_check
      _
    $region3: #{tpu_custom_call.1} parent=1 // pred_check_branch
      %14 = sbr.rel (0) target = $region5
    $region4: #{tpu_custom_call.1} parent=1 // pred_region
      %s16 = ssub.s32 256, 256
      %17 = vsyncadd [#allocation3], %s16
      %s18 = sshll.u32 [#allocation2], 4
      %s19 = int_to_ptr.vmem [resolvable:$true] %s18
      %24 = dma.hbm_to_vmem [thread:$0]  %s0, 256, %s19, [#allocation3], 128, 128, 8
    $region5: #{tpu_custom_call.1} parent=1 // pred_fallthru
      _
    // Predicated region
    $region6: #{tpu_custom_call.1} parent=1 // pred_check
      _
    $region7: #{tpu_custom_call.1} parent=1 // pred_check_branch
      %26 = sbr.rel (0) target = $region9
    $region8: #{tpu_custom_call.1} parent=1 // pred_region
      %s28 = ssub.s32 32, 32
      %29 = vsyncadd [#allocation5], %s28
      %s31 = sshll.u32 %s1, 4
      %s32 = int_to_ptr.vmem [resolvable:$true] %s31
      %34 = dma.vmem_to_smem %s32, 32, [#allocation6], [#allocation5]
    $region9: #{tpu_custom_call.1} parent=1 // pred_fallthru
      _
    // Predicated region
    $region10: #{tpu_custom_call.1} parent=1 // pred_check
      _
    $region11: #{tpu_custom_call.1} parent=1 // pred_check_branch
      %36 = sbr.rel (0) target = $region13
    $region12: #{tpu_custom_call.1} parent=1 // pred_region
      %37 = dma.done [#allocation3], 256
    $region13: #{tpu_custom_call.1} parent=1 // pred_fallthru
      _
    // Predicated region
    $region14: #{tpu_custom_call.1} parent=1 // pred_check
      _
    $region15: #{tpu_custom_call.1} parent=1 // pred_check_branch
      %39 = sbr.rel (0) target = $region17
    $region16: #{tpu_custom_call.1} parent=1 // pred_region
      %40 = dma.done [#allocation5], 32
    $region17: #{tpu_custom_call.1} parent=1 // pred_fallthru
      _
    %41 = sfence
    %s42 = sld [smem:[#allocation6]]
    %s43 = sld [smem:[#allocation6 + $0x1]]
    %s44 = sld [smem:[#allocation6 + $0x2]]
    %s45 = sld [smem:[#allocation6 + $0x3]]
    %s46 = sld [smem:[#allocation6 + $0x4]]
    %s47 = sld [smem:[#allocation6 + $0x5]]
    %s48 = sld [smem:[#allocation6 + $0x6]]
    %s49 = sld [smem:[#allocation6 + $0x7]]
    %s50 = sld [smem:[#allocation6 + $0x8]]
    %s51 = sld [smem:[#allocation6 + $0x9]]
    %s52 = sld [smem:[#allocation6 + $0xa]]
    %s53 = sld [smem:[#allocation6 + $0xb]]
    %s54 = sld [smem:[#allocation6 + $0xc]]
    %s55 = sld [smem:[#allocation6 + $0xd]]
    %s56 = sld [smem:[#allocation6 + $0xe]]
    %s57 = sld [smem:[#allocation6 + $0xf]]
    %s58 = sld [smem:[#allocation6 + $0x10]]
    %s59 = sld [smem:[#allocation6 + $0x11]]
    %s60 = sld [smem:[#allocation6 + $0x12]]
    %s61 = sld [smem:[#allocation6 + $0x13]]
    %s62 = sld [smem:[#allocation6 + $0x14]]
    %s63 = sld [smem:[#allocation6 + $0x15]]
    %s64 = sld [smem:[#allocation6 + $0x16]]
    %s65 = sld [smem:[#allocation6 + $0x17]]
    %s66 = sld [smem:[#allocation6 + $0x18]]
    %s67 = sld [smem:[#allocation6 + $0x19]]
    %s68 = sld [smem:[#allocation6 + $0x1a]]
    %s69 = sld [smem:[#allocation6 + $0x1b]]
    %s70 = sld [smem:[#allocation6 + $0x1c]]
    %s71 = sld [smem:[#allocation6 + $0x1d]]
    %s72 = sld [smem:[#allocation6 + $0x1e]]
    %s73 = sld [smem:[#allocation6 + $0x1f]]
    %s74 = sld [smem:[#allocation6 + $0x20]]
    %s75 = sld [smem:[#allocation6 + $0x21]]
    %s76 = sld [smem:[#allocation6 + $0x22]]
    %s77 = sld [smem:[#allocation6 + $0x23]]
    %s78 = sld [smem:[#allocation6 + $0x24]]
    %s79 = sld [smem:[#allocation6 + $0x25]]
    %s80 = sld [smem:[#allocation6 + $0x26]]
    %s81 = sld [smem:[#allocation6 + $0x27]]
    %s82 = sld [smem:[#allocation6 + $0x28]]
    %s83 = sld [smem:[#allocation6 + $0x29]]
    %s84 = sld [smem:[#allocation6 + $0x2a]]
    %s85 = sld [smem:[#allocation6 + $0x2b]]
    %s86 = sld [smem:[#allocation6 + $0x2c]]
    %s87 = sld [smem:[#allocation6 + $0x2d]]
    %s88 = sld [smem:[#allocation6 + $0x2e]]
    %s89 = sld [smem:[#allocation6 + $0x2f]]
    %s90 = sld [smem:[#allocation6 + $0x30]]
    %s91 = sld [smem:[#allocation6 + $0x31]]
    %s92 = sld [smem:[#allocation6 + $0x32]]
    %s93 = sld [smem:[#allocation6 + $0x33]]
    %s94 = sld [smem:[#allocation6 + $0x34]]
    %s95 = sld [smem:[#allocation6 + $0x35]]
    %s96 = sld [smem:[#allocation6 + $0x36]]
    %s97 = sld [smem:[#allocation6 + $0x37]]
    %s98 = sld [smem:[#allocation6 + $0x38]]
    %s99 = sld [smem:[#allocation6 + $0x39]]
    %s100 = sld [smem:[#allocation6 + $0x3a]]
    %s101 = sld [smem:[#allocation6 + $0x3b]]
    %s102 = sld [smem:[#allocation6 + $0x3c]]
    %s103 = sld [smem:[#allocation6 + $0x3d]]
    %s104 = sld [smem:[#allocation6 + $0x3e]]
    %s105 = sld [smem:[#allocation6 + $0x3f]]
    %s106 = sld [smem:[#allocation6 + $0x40]]
    %s107 = sld [smem:[#allocation6 + $0x41]]
    %s108 = sld [smem:[#allocation6 + $0x42]]
    %s109 = sld [smem:[#allocation6 + $0x43]]
    %s110 = sld [smem:[#allocation6 + $0x44]]
    %s111 = sld [smem:[#allocation6 + $0x45]]
    %s112 = sld [smem:[#allocation6 + $0x46]]
    %s113 = sld [smem:[#allocation6 + $0x47]]
    %s114 = sld [smem:[#allocation6 + $0x48]]
    %s115 = sld [smem:[#allocation6 + $0x49]]
    %s116 = sld [smem:[#allocation6 + $0x4a]]
    %s117 = sld [smem:[#allocation6 + $0x4b]]
    %s118 = sld [smem:[#allocation6 + $0x4c]]
    %s119 = sld [smem:[#allocation6 + $0x4d]]
    %s120 = sld [smem:[#allocation6 + $0x4e]]
    %s121 = sld [smem:[#allocation6 + $0x4f]]
    %s122 = sld [smem:[#allocation6 + $0x50]]
    %s123 = sld [smem:[#allocation6 + $0x51]]
    %s124 = sld [smem:[#allocation6 + $0x52]]
    %s125 = sld [smem:[#allocation6 + $0x53]]
    %s126 = sld [smem:[#allocation6 + $0x54]]
    %s127 = sld [smem:[#allocation6 + $0x55]]
    %s128 = sld [smem:[#allocation6 + $0x56]]
    %s129 = sld [smem:[#allocation6 + $0x57]]
    %s130 = sld [smem:[#allocation6 + $0x58]]
    %s131 = sld [smem:[#allocation6 + $0x59]]
    %s132 = sld [smem:[#allocation6 + $0x5a]]
    %s133 = sld [smem:[#allocation6 + $0x5b]]
    %s134 = sld [smem:[#allocation6 + $0x5c]]
    %s135 = sld [smem:[#allocation6 + $0x5d]]
    %s136 = sld [smem:[#allocation6 + $0x5e]]
    %s137 = sld [smem:[#allocation6 + $0x5f]]
    %s138 = sld [smem:[#allocation6 + $0x60]]
    %s139 = sld [smem:[#allocation6 + $0x61]]
    %s140 = sld [smem:[#allocation6 + $0x62]]
    %s141 = sld [smem:[#allocation6 + $0x63]]
    %s142 = sld [smem:[#allocation6 + $0x64]]
    %s143 = sld [smem:[#allocation6 + $0x65]]
    %s144 = sld [smem:[#allocation6 + $0x66]]
    %s145 = sld [smem:[#allocation6 + $0x67]]
    %s146 = sld [smem:[#allocation6 + $0x68]]
    %s147 = sld [smem:[#allocation6 + $0x69]]
    %s148 = sld [smem:[#allocation6 + $0x6a]]
    %s149 = sld [smem:[#allocation6 + $0x6b]]
    %s150 = sld [smem:[#allocation6 + $0x6c]]
    %s151 = sld [smem:[#allocation6 + $0x6d]]
    %s152 = sld [smem:[#allocation6 + $0x6e]]
    %s153 = sld [smem:[#allocation6 + $0x6f]]
    %s154 = sld [smem:[#allocation6 + $0x70]]
    %s155 = sld [smem:[#allocation6 + $0x71]]
    %s156 = sld [smem:[#allocation6 + $0x72]]
    %s157 = sld [smem:[#allocation6 + $0x73]]
    %s158 = sld [smem:[#allocation6 + $0x74]]
    %s159 = sld [smem:[#allocation6 + $0x75]]
    %s160 = sld [smem:[#allocation6 + $0x76]]
    %s161 = sld [smem:[#allocation6 + $0x77]]
    %s162 = sld [smem:[#allocation6 + $0x78]]
    %s163 = sld [smem:[#allocation6 + $0x79]]
    %s164 = sld [smem:[#allocation6 + $0x7a]]
    %s165 = sld [smem:[#allocation6 + $0x7b]]
    %s166 = sld [smem:[#allocation6 + $0x7c]]
    %s167 = sld [smem:[#allocation6 + $0x7d]]
    %s168 = sld [smem:[#allocation6 + $0x7e]]
    %s169 = sld [smem:[#allocation6 + $0x7f]]
    %s170 = sld [smem:[#allocation6 + $0x80]]
    %s171 = sld [smem:[#allocation6 + $0x81]]
    %s172 = sld [smem:[#allocation6 + $0x82]]
    %s173 = sld [smem:[#allocation6 + $0x83]]
    %s174 = sld [smem:[#allocation6 + $0x84]]
    %s175 = sld [smem:[#allocation6 + $0x85]]
    %s176 = sld [smem:[#allocation6 + $0x86]]
    %s177 = sld [smem:[#allocation6 + $0x87]]
    %s178 = sld [smem:[#allocation6 + $0x88]]
    %s179 = sld [smem:[#allocation6 + $0x89]]
    %s180 = sld [smem:[#allocation6 + $0x8a]]
    %s181 = sld [smem:[#allocation6 + $0x8b]]
    %s182 = sld [smem:[#allocation6 + $0x8c]]
    %s183 = sld [smem:[#allocation6 + $0x8d]]
    %s184 = sld [smem:[#allocation6 + $0x8e]]
    %s185 = sld [smem:[#allocation6 + $0x8f]]
    %s186 = sld [smem:[#allocation6 + $0x90]]
    %s187 = sld [smem:[#allocation6 + $0x91]]
    %s188 = sld [smem:[#allocation6 + $0x92]]
    %s189 = sld [smem:[#allocation6 + $0x93]]
    %s190 = sld [smem:[#allocation6 + $0x94]]
    %s191 = sld [smem:[#allocation6 + $0x95]]
    %s192 = sld [smem:[#allocation6 + $0x96]]
    %s193 = sld [smem:[#allocation6 + $0x97]]
    %v194 = vld [vmem:[#allocation2] sm:$0xff]
    %v195 = vld [vmem:[#allocation2 + $0x8] sm:$0xff]
    %v196 = vstv %s42
    %v197 = vmul.f32 %v194, %v196
    %v198 = vmul.f32 %v195, %v196
    %v199 = vstv %s52
    %v200 = vadd.f32 %v197, %v199
    %v201 = vadd.f32 %v198, %v199
    %v202 = vmax.f32 %v200, 0.0
    %v203 = vmax.f32 %v201, 0.0
    %v204 = vstv %s43
    %v205 = vmul.f32 %v194, %v204
    %v206 = vmul.f32 %v195, %v204
    %v207 = vstv %s53
    %v208 = vadd.f32 %v205, %v207
    %v209 = vadd.f32 %v206, %v207
    %v210 = vmax.f32 %v208, 0.0
    %v211 = vmax.f32 %v209, 0.0
    %v212 = vstv %s44
    %v213 = vmul.f32 %v194, %v212
    %v214 = vmul.f32 %v195, %v212
    %v215 = vstv %s54
    %v216 = vadd.f32 %v213, %v215
    %v217 = vadd.f32 %v214, %v215
    %v218 = vmax.f32 %v216, 0.0
    %v219 = vmax.f32 %v217, 0.0
    %v220 = vstv %s45
    %v221 = vmul.f32 %v194, %v220
    %v222 = vmul.f32 %v195, %v220
    %v223 = vstv %s55
    %v224 = vadd.f32 %v221, %v223
    %v225 = vadd.f32 %v222, %v223
    %v226 = vmax.f32 %v224, 0.0
    %v227 = vmax.f32 %v225, 0.0
    %v228 = vstv %s46
    %v229 = vmul.f32 %v194, %v228
    %v230 = vmul.f32 %v195, %v228
    %v231 = vstv %s56
    %v232 = vadd.f32 %v229, %v231
    %v233 = vadd.f32 %v230, %v231
    %v234 = vmax.f32 %v232, 0.0
    %v235 = vmax.f32 %v233, 0.0
    %v236 = vstv %s47
    %v237 = vmul.f32 %v194, %v236
    %v238 = vmul.f32 %v195, %v236
    %v239 = vstv %s57
    %v240 = vadd.f32 %v237, %v239
    %v241 = vadd.f32 %v238, %v239
    %v242 = vmax.f32 %v240, 0.0
    %v243 = vmax.f32 %v241, 0.0
    %v244 = vstv %s48
    %v245 = vmul.f32 %v194, %v244
    %v246 = vmul.f32 %v195, %v244
    %v247 = vstv %s58
    %v248 = vadd.f32 %v245, %v247
    %v249 = vadd.f32 %v246, %v247
    %v250 = vmax.f32 %v248, 0.0
    %v251 = vmax.f32 %v249, 0.0
    %v252 = vstv %s49
    %v253 = vmul.f32 %v194, %v252
    %v254 = vmul.f32 %v195, %v252
    %v255 = vstv %s59
    %v256 = vadd.f32 %v253, %v255
    %v257 = vadd.f32 %v254, %v255
    %v258 = vmax.f32 %v256, 0.0
    %v259 = vmax.f32 %v257, 0.0
    %v260 = vstv %s50
    %v261 = vmul.f32 %v194, %v260
    %v262 = vmul.f32 %v195, %v260
    %v263 = vstv %s60
    %v264 = vadd.f32 %v261, %v263
    %v265 = vadd.f32 %v262, %v263
    %v266 = vmax.f32 %v264, 0.0
    %v267 = vmax.f32 %v265, 0.0
    %v268 = vstv %s51
    %v269 = vmul.f32 %v194, %v268
    %v270 = vmul.f32 %v195, %v268
    %v271 = vstv %s61
    %v272 = vadd.f32 %v269, %v271
    %v273 = vadd.f32 %v270, %v271
    %v274 = vmax.f32 %v272, 0.0
    %v275 = vmax.f32 %v273, 0.0
    %v276 = vstv %s62
    %v277 = vmul.f32 %v202, %v276
    %v278 = vmul.f32 %v203, %v276
    %v279 = vstv %s72
    %v280 = vmul.f32 %v210, %v279
    %v281 = vmul.f32 %v211, %v279
    %v282 = vadd.f32 %v277, %v280
    %v283 = vadd.f32 %v278, %v281
    %v284 = vstv %s82
    %v285 = vmul.f32 %v218, %v284
    %v286 = vmul.f32 %v219, %v284
    %v287 = vadd.f32 %v282, %v285
    %v288 = vadd.f32 %v283, %v286
    %v289 = vstv %s92
    %v290 = vmul.f32 %v226, %v289
    %v291 = vmul.f32 %v227, %v289
    %v292 = vadd.f32 %v287, %v290
    %v293 = vadd.f32 %v288, %v291
    %v294 = vstv %s102
    %v295 = vmul.f32 %v234, %v294
    %v296 = vmul.f32 %v235, %v294
    %v297 = vadd.f32 %v292, %v295
    %v298 = vadd.f32 %v293, %v296
    %v299 = vstv %s112
    %v300 = vmul.f32 %v242, %v299
    %v301 = vmul.f32 %v243, %v299
    %v302 = vadd.f32 %v297, %v300
    %v303 = vadd.f32 %v298, %v301
    %v304 = vstv %s122
    %v305 = vmul.f32 %v250, %v304
    %v306 = vmul.f32 %v251, %v304
    %v307 = vadd.f32 %v302, %v305
    %v308 = vadd.f32 %v303, %v306
    %v309 = vstv %s132
    %v310 = vmul.f32 %v258, %v309
    %v311 = vmul.f32 %v259, %v309
    %v312 = vadd.f32 %v307, %v310
    %v313 = vadd.f32 %v308, %v311
    %v314 = vstv %s142
    %v315 = vmul.f32 %v266, %v314
    %v316 = vmul.f32 %v267, %v314
    %v317 = vadd.f32 %v312, %v315
    %v318 = vadd.f32 %v313, %v316
    %v319 = vstv %s152
    %v320 = vmul.f32 %v274, %v319
    %v321 = vmul.f32 %v275, %v319
    %v322 = vadd.f32 %v317, %v320
    %v323 = vadd.f32 %v318, %v321
    %v324 = vstv %s162
    %v325 = vadd.f32 %v322, %v324
    %v326 = vadd.f32 %v323, %v324
    %v327 = vmax.f32 %v325, 0.0
    %v328 = vmax.f32 %v326, 0.0
    %v329 = vstv %s63
    %v330 = vmul.f32 %v202, %v329
    %v331 = vmul.f32 %v203, %v329
    %v332 = vstv %s73
    %v333 = vmul.f32 %v210, %v332
    %v334 = vmul.f32 %v211, %v332
    %v335 = vadd.f32 %v330, %v333
    %v336 = vadd.f32 %v331, %v334
    %v337 = vstv %s83
    %v338 = vmul.f32 %v218, %v337
    %v339 = vmul.f32 %v219, %v337
    %v340 = vadd.f32 %v335, %v338
    %v341 = vadd.f32 %v336, %v339
    %v342 = vstv %s93
    %v343 = vmul.f32 %v226, %v342
    %v344 = vmul.f32 %v227, %v342
    %v345 = vadd.f32 %v340, %v343
    %v346 = vadd.f32 %v341, %v344
    %v347 = vstv %s103
    %v348 = vmul.f32 %v234, %v347
    %v349 = vmul.f32 %v235, %v347
    %v350 = vadd.f32 %v345, %v348
    %v351 = vadd.f32 %v346, %v349
    %v352 = vstv %s113
    %v353 = vmul.f32 %v242, %v352
    %v354 = vmul.f32 %v243, %v352
    %v355 = vadd.f32 %v350, %v353
    %v356 = vadd.f32 %v351, %v354
    %v357 = vstv %s123
    %v358 = vmul.f32 %v250, %v357
    %v359 = vmul.f32 %v251, %v357
    %v360 = vadd.f32 %v355, %v358
    %v361 = vadd.f32 %v356, %v359
    %v362 = vstv %s133
    %v363 = vmul.f32 %v258, %v362
    %v364 = vmul.f32 %v259, %v362
    %v365 = vadd.f32 %v360, %v363
    %v366 = vadd.f32 %v361, %v364
    %v367 = vstv %s143
    %v368 = vmul.f32 %v266, %v367
    %v369 = vmul.f32 %v267, %v367
    %v370 = vadd.f32 %v365, %v368
    %v371 = vadd.f32 %v366, %v369
    %v372 = vstv %s153
    %v373 = vmul.f32 %v274, %v372
    %v374 = vmul.f32 %v275, %v372
    %v375 = vadd.f32 %v370, %v373
    %v376 = vadd.f32 %v371, %v374
    %v377 = vstv %s163
    %v378 = vadd.f32 %v375, %v377
    %v379 = vadd.f32 %v376, %v377
    %v380 = vmax.f32 %v378, 0.0
    %v381 = vmax.f32 %v379, 0.0
    %v382 = vstv %s64
    %v383 = vmul.f32 %v202, %v382
    %v384 = vmul.f32 %v203, %v382
    %v385 = vstv %s74
    %v386 = vmul.f32 %v210, %v385
    %v387 = vmul.f32 %v211, %v385
    %v388 = vadd.f32 %v383, %v386
    %v389 = vadd.f32 %v384, %v387
    %v390 = vstv %s84
    %v391 = vmul.f32 %v218, %v390
    %v392 = vmul.f32 %v219, %v390
    %v393 = vadd.f32 %v388, %v391
    %v394 = vadd.f32 %v389, %v392
    %v395 = vstv %s94
    %v396 = vmul.f32 %v226, %v395
    %v397 = vmul.f32 %v227, %v395
    %v398 = vadd.f32 %v393, %v396
    %v399 = vadd.f32 %v394, %v397
    %v400 = vstv %s104
    %v401 = vmul.f32 %v234, %v400
    %v402 = vmul.f32 %v235, %v400
    %v403 = vadd.f32 %v398, %v401
    %v404 = vadd.f32 %v399, %v402
    %v405 = vstv %s114
    %v406 = vmul.f32 %v242, %v405
    %v407 = vmul.f32 %v243, %v405
    %v408 = vadd.f32 %v403, %v406
    %v409 = vadd.f32 %v404, %v407
    %v410 = vstv %s124
    %v411 = vmul.f32 %v250, %v410
    %v412 = vmul.f32 %v251, %v410
    %v413 = vadd.f32 %v408, %v411
    %v414 = vadd.f32 %v409, %v412
    %v415 = vstv %s134
    %v416 = vmul.f32 %v258, %v415
    %v417 = vmul.f32 %v259, %v415
    %v418 = vadd.f32 %v413, %v416
    %v419 = vadd.f32 %v414, %v417
    %v420 = vstv %s144
    %v421 = vmul.f32 %v266, %v420
    %v422 = vmul.f32 %v267, %v420
    %v423 = vadd.f32 %v418, %v421
    %v424 = vadd.f32 %v419, %v422
    %v425 = vstv %s154
    %v426 = vmul.f32 %v274, %v425
    %v427 = vmul.f32 %v275, %v425
    %v428 = vadd.f32 %v423, %v426
    %v429 = vadd.f32 %v424, %v427
    %v430 = vstv %s164
    %v431 = vadd.f32 %v428, %v430
    %v432 = vadd.f32 %v429, %v430
    %v433 = vmax.f32 %v431, 0.0
    %v434 = vmax.f32 %v432, 0.0
    %v435 = vstv %s65
    %v436 = vmul.f32 %v202, %v435
    %v437 = vmul.f32 %v203, %v435
    %v438 = vstv %s75
    %v439 = vmul.f32 %v210, %v438
    %v440 = vmul.f32 %v211, %v438
    %v441 = vadd.f32 %v436, %v439
    %v442 = vadd.f32 %v437, %v440
    %v443 = vstv %s85
    %v444 = vmul.f32 %v218, %v443
    %v445 = vmul.f32 %v219, %v443
    %v446 = vadd.f32 %v441, %v444
    %v447 = vadd.f32 %v442, %v445
    %v448 = vstv %s95
    %v449 = vmul.f32 %v226, %v448
    %v450 = vmul.f32 %v227, %v448
    %v451 = vadd.f32 %v446, %v449
    %v452 = vadd.f32 %v447, %v450
    %v453 = vstv %s105
    %v454 = vmul.f32 %v234, %v453
    %v455 = vmul.f32 %v235, %v453
    %v456 = vadd.f32 %v451, %v454
    %v457 = vadd.f32 %v452, %v455
    %v458 = vstv %s115
    %v459 = vmul.f32 %v242, %v458
    %v460 = vmul.f32 %v243, %v458
    %v461 = vadd.f32 %v456, %v459
    %v462 = vadd.f32 %v457, %v460
    %v463 = vstv %s125
    %v464 = vmul.f32 %v250, %v463
    %v465 = vmul.f32 %v251, %v463
    %v466 = vadd.f32 %v461, %v464
    %v467 = vadd.f32 %v462, %v465
    %v468 = vstv %s135
    %v469 = vmul.f32 %v258, %v468
    %v470 = vmul.f32 %v259, %v468
    %v471 = vadd.f32 %v466, %v469
    %v472 = vadd.f32 %v467, %v470
    %v473 = vstv %s145
    %v474 = vmul.f32 %v266, %v473
    %v475 = vmul.f32 %v267, %v473
    %v476 = vadd.f32 %v471, %v474
    %v477 = vadd.f32 %v472, %v475
    %v478 = vstv %s155
    %v479 = vmul.f32 %v274, %v478
    %v480 = vmul.f32 %v275, %v478
    %v481 = vadd.f32 %v476, %v479
    %v482 = vadd.f32 %v477, %v480
    %v483 = vstv %s165
    %v484 = vadd.f32 %v481, %v483
    %v485 = vadd.f32 %v482, %v483
    %v486 = vmax.f32 %v484, 0.0
    %v487 = vmax.f32 %v485, 0.0
    %v488 = vstv %s66
    %v489 = vmul.f32 %v202, %v488
    %v490 = vmul.f32 %v203, %v488
    %v491 = vstv %s76
    %v492 = vmul.f32 %v210, %v491
    %v493 = vmul.f32 %v211, %v491
    %v494 = vadd.f32 %v489, %v492
    %v495 = vadd.f32 %v490, %v493
    %v496 = vstv %s86
    %v497 = vmul.f32 %v218, %v496
    %v498 = vmul.f32 %v219, %v496
    %v499 = vadd.f32 %v494, %v497
    %v500 = vadd.f32 %v495, %v498
    %v501 = vstv %s96
    %v502 = vmul.f32 %v226, %v501
    %v503 = vmul.f32 %v227, %v501
    %v504 = vadd.f32 %v499, %v502
    %v505 = vadd.f32 %v500, %v503
    %v506 = vstv %s106
    %v507 = vmul.f32 %v234, %v506
    %v508 = vmul.f32 %v235, %v506
    %v509 = vadd.f32 %v504, %v507
    %v510 = vadd.f32 %v505, %v508
    %v511 = vstv %s116
    %v512 = vmul.f32 %v242, %v511
    %v513 = vmul.f32 %v243, %v511
    %v514 = vadd.f32 %v509, %v512
    %v515 = vadd.f32 %v510, %v513
    %v516 = vstv %s126
    %v517 = vmul.f32 %v250, %v516
    %v518 = vmul.f32 %v251, %v516
    %v519 = vadd.f32 %v514, %v517
    %v520 = vadd.f32 %v515, %v518
    %v521 = vstv %s136
    %v522 = vmul.f32 %v258, %v521
    %v523 = vmul.f32 %v259, %v521
    %v524 = vadd.f32 %v519, %v522
    %v525 = vadd.f32 %v520, %v523
    %v526 = vstv %s146
    %v527 = vmul.f32 %v266, %v526
    %v528 = vmul.f32 %v267, %v526
    %v529 = vadd.f32 %v524, %v527
    %v530 = vadd.f32 %v525, %v528
    %v531 = vstv %s156
    %v532 = vmul.f32 %v274, %v531
    %v533 = vmul.f32 %v275, %v531
    %v534 = vadd.f32 %v529, %v532
    %v535 = vadd.f32 %v530, %v533
    %v536 = vstv %s166
    %v537 = vadd.f32 %v534, %v536
    %v538 = vadd.f32 %v535, %v536
    %v539 = vmax.f32 %v537, 0.0
    %v540 = vmax.f32 %v538, 0.0
    %v541 = vstv %s67
    %v542 = vmul.f32 %v202, %v541
    %v543 = vmul.f32 %v203, %v541
    %v544 = vstv %s77
    %v545 = vmul.f32 %v210, %v544
    %v546 = vmul.f32 %v211, %v544
    %v547 = vadd.f32 %v542, %v545
    %v548 = vadd.f32 %v543, %v546
    %v549 = vstv %s87
    %v550 = vmul.f32 %v218, %v549
    %v551 = vmul.f32 %v219, %v549
    %v552 = vadd.f32 %v547, %v550
    %v553 = vadd.f32 %v548, %v551
    %v554 = vstv %s97
    %v555 = vmul.f32 %v226, %v554
    %v556 = vmul.f32 %v227, %v554
    %v557 = vadd.f32 %v552, %v555
    %v558 = vadd.f32 %v553, %v556
    %v559 = vstv %s107
    %v560 = vmul.f32 %v234, %v559
    %v561 = vmul.f32 %v235, %v559
    %v562 = vadd.f32 %v557, %v560
    %v563 = vadd.f32 %v558, %v561
    %v564 = vstv %s117
    %v565 = vmul.f32 %v242, %v564
    %v566 = vmul.f32 %v243, %v564
    %v567 = vadd.f32 %v562, %v565
    %v568 = vadd.f32 %v563, %v566
    %v569 = vstv %s127
    %v570 = vmul.f32 %v250, %v569
    %v571 = vmul.f32 %v251, %v569
    %v572 = vadd.f32 %v567, %v570
    %v573 = vadd.f32 %v568, %v571
    %v574 = vstv %s137
    %v575 = vmul.f32 %v258, %v574
    %v576 = vmul.f32 %v259, %v574
    %v577 = vadd.f32 %v572, %v575
    %v578 = vadd.f32 %v573, %v576
    %v579 = vstv %s147
    %v580 = vmul.f32 %v266, %v579
    %v581 = vmul.f32 %v267, %v579
    %v582 = vadd.f32 %v577, %v580
    %v583 = vadd.f32 %v578, %v581
    %v584 = vstv %s157
    %v585 = vmul.f32 %v274, %v584
    %v586 = vmul.f32 %v275, %v584
    %v587 = vadd.f32 %v582, %v585
    %v588 = vadd.f32 %v583, %v586
    %v589 = vstv %s167
    %v590 = vadd.f32 %v587, %v589
    %v591 = vadd.f32 %v588, %v589
    %v592 = vmax.f32 %v590, 0.0
    %v593 = vmax.f32 %v591, 0.0
    %v594 = vstv %s68
    %v595 = vmul.f32 %v202, %v594
    %v596 = vmul.f32 %v203, %v594
    %v597 = vstv %s78
    %v598 = vmul.f32 %v210, %v597
    %v599 = vmul.f32 %v211, %v597
    %v600 = vadd.f32 %v595, %v598
    %v601 = vadd.f32 %v596, %v599
    %v602 = vstv %s88
    %v603 = vmul.f32 %v218, %v602
    %v604 = vmul.f32 %v219, %v602
    %v605 = vadd.f32 %v600, %v603
    %v606 = vadd.f32 %v601, %v604
    %v607 = vstv %s98
    %v608 = vmul.f32 %v226, %v607
    %v609 = vmul.f32 %v227, %v607
    %v610 = vadd.f32 %v605, %v608
    %v611 = vadd.f32 %v606, %v609
    %v612 = vstv %s108
    %v613 = vmul.f32 %v234, %v612
    %v614 = vmul.f32 %v235, %v612
    %v615 = vadd.f32 %v610, %v613
    %v616 = vadd.f32 %v611, %v614
    %v617 = vstv %s118
    %v618 = vmul.f32 %v242, %v617
    %v619 = vmul.f32 %v243, %v617
    %v620 = vadd.f32 %v615, %v618
    %v621 = vadd.f32 %v616, %v619
    %v622 = vstv %s128
    %v623 = vmul.f32 %v250, %v622
    %v624 = vmul.f32 %v251, %v622
    %v625 = vadd.f32 %v620, %v623
    %v626 = vadd.f32 %v621, %v624
    %v627 = vstv %s138
    %v628 = vmul.f32 %v258, %v627
    %v629 = vmul.f32 %v259, %v627
    %v630 = vadd.f32 %v625, %v628
    %v631 = vadd.f32 %v626, %v629
    %v632 = vstv %s148
    %v633 = vmul.f32 %v266, %v632
    %v634 = vmul.f32 %v267, %v632
    %v635 = vadd.f32 %v630, %v633
    %v636 = vadd.f32 %v631, %v634
    %v637 = vstv %s158
    %v638 = vmul.f32 %v274, %v637
    %v639 = vmul.f32 %v275, %v637
    %v640 = vadd.f32 %v635, %v638
    %v641 = vadd.f32 %v636, %v639
    %v642 = vstv %s168
    %v643 = vadd.f32 %v640, %v642
    %v644 = vadd.f32 %v641, %v642
    %v645 = vmax.f32 %v643, 0.0
    %v646 = vmax.f32 %v644, 0.0
    %v647 = vstv %s69
    %v648 = vmul.f32 %v202, %v647
    %v649 = vmul.f32 %v203, %v647
    %v650 = vstv %s79
    %v651 = vmul.f32 %v210, %v650
    %v652 = vmul.f32 %v211, %v650
    %v653 = vadd.f32 %v648, %v651
    %v654 = vadd.f32 %v649, %v652
    %v655 = vstv %s89
    %v656 = vmul.f32 %v218, %v655
    %v657 = vmul.f32 %v219, %v655
    %v658 = vadd.f32 %v653, %v656
    %v659 = vadd.f32 %v654, %v657
    %v660 = vstv %s99
    %v661 = vmul.f32 %v226, %v660
    %v662 = vmul.f32 %v227, %v660
    %v663 = vadd.f32 %v658, %v661
    %v664 = vadd.f32 %v659, %v662
    %v665 = vstv %s109
    %v666 = vmul.f32 %v234, %v665
    %v667 = vmul.f32 %v235, %v665
    %v668 = vadd.f32 %v663, %v666
    %v669 = vadd.f32 %v664, %v667
    %v670 = vstv %s119
    %v671 = vmul.f32 %v242, %v670
    %v672 = vmul.f32 %v243, %v670
    %v673 = vadd.f32 %v668, %v671
    %v674 = vadd.f32 %v669, %v672
    %v675 = vstv %s129
    %v676 = vmul.f32 %v250, %v675
    %v677 = vmul.f32 %v251, %v675
    %v678 = vadd.f32 %v673, %v676
    %v679 = vadd.f32 %v674, %v677
    %v680 = vstv %s139
    %v681 = vmul.f32 %v258, %v680
    %v682 = vmul.f32 %v259, %v680
    %v683 = vadd.f32 %v678, %v681
    %v684 = vadd.f32 %v679, %v682
    %v685 = vstv %s149
    %v686 = vmul.f32 %v266, %v685
    %v687 = vmul.f32 %v267, %v685
    %v688 = vadd.f32 %v683, %v686
    %v689 = vadd.f32 %v684, %v687
    %v690 = vstv %s159
    %v691 = vmul.f32 %v274, %v690
    %v692 = vmul.f32 %v275, %v690
    %v693 = vadd.f32 %v688, %v691
    %v694 = vadd.f32 %v689, %v692
    %v695 = vstv %s169
    %v696 = vadd.f32 %v693, %v695
    %v697 = vadd.f32 %v694, %v695
    %v698 = vmax.f32 %v696, 0.0
    %v699 = vmax.f32 %v697, 0.0
    %v700 = vstv %s70
    %v701 = vmul.f32 %v202, %v700
    %v702 = vmul.f32 %v203, %v700
    %v703 = vstv %s80
    %v704 = vmul.f32 %v210, %v703
    %v705 = vmul.f32 %v211, %v703
    %v706 = vadd.f32 %v701, %v704
    %v707 = vadd.f32 %v702, %v705
    %v708 = vstv %s90
    %v709 = vmul.f32 %v218, %v708
    %v710 = vmul.f32 %v219, %v708
    %v711 = vadd.f32 %v706, %v709
    %v712 = vadd.f32 %v707, %v710
    %v713 = vstv %s100
    %v714 = vmul.f32 %v226, %v713
    %v715 = vmul.f32 %v227, %v713
    %v716 = vadd.f32 %v711, %v714
    %v717 = vadd.f32 %v712, %v715
    %v718 = vstv %s110
    %v719 = vmul.f32 %v234, %v718
    %v720 = vmul.f32 %v235, %v718
    %v721 = vadd.f32 %v716, %v719
    %v722 = vadd.f32 %v717, %v720
    %v723 = vstv %s120
    %v724 = vmul.f32 %v242, %v723
    %v725 = vmul.f32 %v243, %v723
    %v726 = vadd.f32 %v721, %v724
    %v727 = vadd.f32 %v722, %v725
    %v728 = vstv %s130
    %v729 = vmul.f32 %v250, %v728
    %v730 = vmul.f32 %v251, %v728
    %v731 = vadd.f32 %v726, %v729
    %v732 = vadd.f32 %v727, %v730
    %v733 = vstv %s140
    %v734 = vmul.f32 %v258, %v733
    %v735 = vmul.f32 %v259, %v733
    %v736 = vadd.f32 %v731, %v734
    %v737 = vadd.f32 %v732, %v735
    %v738 = vstv %s150
    %v739 = vmul.f32 %v266, %v738
    %v740 = vmul.f32 %v267, %v738
    %v741 = vadd.f32 %v736, %v739
    %v742 = vadd.f32 %v737, %v740
    %v743 = vstv %s160
    %v744 = vmul.f32 %v274, %v743
    %v745 = vmul.f32 %v275, %v743
    %v746 = vadd.f32 %v741, %v744
    %v747 = vadd.f32 %v742, %v745
    %v748 = vstv %s170
    %v749 = vadd.f32 %v746, %v748
    %v750 = vadd.f32 %v747, %v748
    %v751 = vmax.f32 %v749, 0.0
    %v752 = vmax.f32 %v750, 0.0
    %v753 = vstv %s71
    %v754 = vmul.f32 %v202, %v753
    %v755 = vmul.f32 %v203, %v753
    %v756 = vstv %s81
    %v757 = vmul.f32 %v210, %v756
    %v758 = vmul.f32 %v211, %v756
    %v759 = vadd.f32 %v754, %v757
    %v760 = vadd.f32 %v755, %v758
    %v761 = vstv %s91
    %v762 = vmul.f32 %v218, %v761
    %v763 = vmul.f32 %v219, %v761
    %v764 = vadd.f32 %v759, %v762
    %v765 = vadd.f32 %v760, %v763
    %v766 = vstv %s101
    %v767 = vmul.f32 %v226, %v766
    %v768 = vmul.f32 %v227, %v766
    %v769 = vadd.f32 %v764, %v767
    %v770 = vadd.f32 %v765, %v768
    %v771 = vstv %s111
    %v772 = vmul.f32 %v234, %v771
    %v773 = vmul.f32 %v235, %v771
    %v774 = vadd.f32 %v769, %v772
    %v775 = vadd.f32 %v770, %v773
    %v776 = vstv %s121
    %v777 = vmul.f32 %v242, %v776
    %v778 = vmul.f32 %v243, %v776
    %v779 = vadd.f32 %v774, %v777
    %v780 = vadd.f32 %v775, %v778
    %v781 = vstv %s131
    %v782 = vmul.f32 %v250, %v781
    %v783 = vmul.f32 %v251, %v781
    %v784 = vadd.f32 %v779, %v782
    %v785 = vadd.f32 %v780, %v783
    %v786 = vstv %s141
    %v787 = vmul.f32 %v258, %v786
    %v788 = vmul.f32 %v259, %v786
    %v789 = vadd.f32 %v784, %v787
    %v790 = vadd.f32 %v785, %v788
    %v791 = vstv %s151
    %v792 = vmul.f32 %v266, %v791
    %v793 = vmul.f32 %v267, %v791
    %v794 = vadd.f32 %v789, %v792
    %v795 = vadd.f32 %v790, %v793
    %v796 = vstv %s161
    %v797 = vmul.f32 %v274, %v796
    %v798 = vmul.f32 %v275, %v796
    %v799 = vadd.f32 %v794, %v797
    %v800 = vadd.f32 %v795, %v798
    %v801 = vstv %s171
    %v802 = vadd.f32 %v799, %v801
    %v803 = vadd.f32 %v800, %v801
    %v804 = vmax.f32 %v802, 0.0
    %v805 = vmax.f32 %v803, 0.0
    %v806 = vstv %s172
    %v807 = vmul.f32 %v327, %v806
    %v808 = vmul.f32 %v328, %v806
    %v809 = vstv %s182
    %v810 = vmul.f32 %v327, %v809
    %v811 = vmul.f32 %v328, %v809
    %v812 = vstv %s173
    %v813 = vmul.f32 %v380, %v812
    %v814 = vmul.f32 %v381, %v812
    %v815 = vadd.f32 %v807, %v813
    %v816 = vadd.f32 %v808, %v814
    %v817 = vstv %s183
    %v818 = vmul.f32 %v380, %v817
    %v819 = vmul.f32 %v381, %v817
    %v820 = vadd.f32 %v810, %v818
    %v821 = vadd.f32 %v811, %v819
    %v822 = vstv %s174
    %v823 = vmul.f32 %v433, %v822
    %v824 = vmul.f32 %v434, %v822
    %v825 = vadd.f32 %v815, %v823
    %v826 = vadd.f32 %v816, %v824
    %v827 = vstv %s184
    %v828 = vmul.f32 %v433, %v827
    %v829 = vmul.f32 %v434, %v827
    %v830 = vadd.f32 %v820, %v828
    %v831 = vadd.f32 %v821, %v829
    %v832 = vstv %s175
    %v833 = vmul.f32 %v486, %v832
    %v834 = vmul.f32 %v487, %v832
    %v835 = vadd.f32 %v825, %v833
    %v836 = vadd.f32 %v826, %v834
    %v837 = vstv %s185
    %v838 = vmul.f32 %v486, %v837
    %v839 = vmul.f32 %v487, %v837
    %v840 = vadd.f32 %v830, %v838
    %v841 = vadd.f32 %v831, %v839
    %v842 = vstv %s176
    %v843 = vmul.f32 %v539, %v842
    %v844 = vmul.f32 %v540, %v842
    %v845 = vadd.f32 %v835, %v843
    %v846 = vadd.f32 %v836, %v844
    %v847 = vstv %s186
    %v848 = vmul.f32 %v539, %v847
    %v849 = vmul.f32 %v540, %v847
    %v850 = vadd.f32 %v840, %v848
    %v851 = vadd.f32 %v841, %v849
    %v852 = vstv %s177
    %v853 = vmul.f32 %v592, %v852
    %v854 = vmul.f32 %v593, %v852
    %v855 = vadd.f32 %v845, %v853
    %v856 = vadd.f32 %v846, %v854
    %v857 = vstv %s187
    %v858 = vmul.f32 %v592, %v857
    %v859 = vmul.f32 %v593, %v857
    %v860 = vadd.f32 %v850, %v858
    %v861 = vadd.f32 %v851, %v859
    %v862 = vstv %s178
    %v863 = vmul.f32 %v645, %v862
    %v864 = vmul.f32 %v646, %v862
    %v865 = vadd.f32 %v855, %v863
    %v866 = vadd.f32 %v856, %v864
    %v867 = vstv %s188
    %v868 = vmul.f32 %v645, %v867
    %v869 = vmul.f32 %v646, %v867
    %v870 = vadd.f32 %v860, %v868
    %v871 = vadd.f32 %v861, %v869
    %v872 = vstv %s179
    %v873 = vmul.f32 %v698, %v872
    %v874 = vmul.f32 %v699, %v872
    %v875 = vadd.f32 %v865, %v873
    %v876 = vadd.f32 %v866, %v874
    %v877 = vstv %s189
    %v878 = vmul.f32 %v698, %v877
    %v879 = vmul.f32 %v699, %v877
    %v880 = vadd.f32 %v870, %v878
    %v881 = vadd.f32 %v871, %v879
    %v882 = vstv %s180
    %v883 = vmul.f32 %v751, %v882
    %v884 = vmul.f32 %v752, %v882
    %v885 = vadd.f32 %v875, %v883
    %v886 = vadd.f32 %v876, %v884
    %v887 = vstv %s190
    %v888 = vmul.f32 %v751, %v887
    %v889 = vmul.f32 %v752, %v887
    %v890 = vadd.f32 %v880, %v888
    %v891 = vadd.f32 %v881, %v889
    %v892 = vstv %s181
    %v893 = vmul.f32 %v804, %v892
    %v894 = vmul.f32 %v805, %v892
    %v895 = vadd.f32 %v885, %v893
    %v896 = vadd.f32 %v886, %v894
    %v897 = vstv %s191
    %v898 = vmul.f32 %v804, %v897
    %v899 = vmul.f32 %v805, %v897
    %v900 = vadd.f32 %v890, %v898
    %v901 = vadd.f32 %v891, %v899
    %v902 = vstv %s192
    %v903 = vadd.f32 %v895, %v902
    %v904 = vadd.f32 %v896, %v902
    %905 = vst [vmem:[#allocation7] sm:$0xff] %v903
    %906 = vst [vmem:[#allocation7 + $0x8] sm:$0xff] %v904
    %v907 = vstv %s193
    %v908 = vadd.f32 %v900, %v907
    %v909 = vadd.f32 %v901, %v907
    %v910 = vmul.f32 %v908, 1.442695
    %v911 = vpow.pop %v910
    %v912 = vmul.f32 %v909, 1.442695
    %v913 = vpow.pop %v912
    %914 = vst [vmem:[#allocation8] sm:$0xff] %v911
    %915 = vst [vmem:[#allocation8 + $0x8] sm:$0xff] %v913
    // Predicated region
    $region18: #{tpu_custom_call.1} parent=1 // pred_check
      _
    $region19: #{tpu_custom_call.1} parent=1 // pred_check_branch
      %917 = sbr.rel (0) target = $region21
    $region20: #{tpu_custom_call.1} parent=1 // pred_region
      %s919 = ssub.s32 256, 256
      %920 = vsyncadd [#allocation4], %s919
      %s921 = sshll.u32 [#allocation7], 4
      %s922 = int_to_ptr.vmem [resolvable:$true] %s921
      %927 = dma.vmem_to_hbm [thread:$0]  %s922, 256, %s2, [#allocation4], 128, 128, 8
    $region21: #{tpu_custom_call.1} parent=1 // pred_fallthru
      _
    // Predicated region
    $region22: #{tpu_custom_call.1} parent=1 // pred_check
      _
    $region23: #{tpu_custom_call.1} parent=1 // pred_check_branch
      %929 = sbr.rel (0) target = $region25
    $region24: #{tpu_custom_call.1} parent=1 // pred_region
      %s931 = ssub.s32 256, 256
      %932 = vsyncadd [#allocation9], %s931
      %s933 = sshll.u32 [#allocation8], 4
      %s934 = int_to_ptr.vmem [resolvable:$true] %s933
      %939 = dma.vmem_to_hbm [thread:$0]  %s934, 256, %s3, [#allocation9], 128, 128, 8
    $region25: #{tpu_custom_call.1} parent=1 // pred_fallthru
      _
    // Predicated region
    $region26: #{tpu_custom_call.1} parent=1 // pred_check
      _
    $region27: #{tpu_custom_call.1} parent=1 // pred_check_branch
      %941 = sbr.rel (0) target = $region29
    $region28: #{tpu_custom_call.1} parent=1 // pred_region
      %942 = dma.done [#allocation4], 256
    $region29: #{tpu_custom_call.1} parent=1 // pred_fallthru
      _
    // Predicated region
    $region30: #{tpu_custom_call.1} parent=1 // pred_check
      _
    $region31: #{tpu_custom_call.1} parent=1 // pred_check_branch
      %944 = sbr.rel (0) target = $region33
    $region32: #{tpu_custom_call.1} parent=1 // pred_region
      %945 = dma.done [#allocation9], 256
    $region33: #{tpu_custom_call.1} parent=1 // pred_fallthru
      _
    %946 = vsyncpa [#allocation3], 1
    %947 = vsyncpa [#allocation4], 1
    %948 = vsyncpa [#allocation9], 1
    %949 = vsyncpa [#allocation5], 1

</llo_original>
